<compile_context>
chip_gen: v7x
topology: tpu7x:2x2x1
jax: 0.10.0
libtpu: 0.0.40
codegen_flags: <defaults>
</compile_context>

<pallas_src>
import math
from functools import partial

import jax
import jax.numpy as jnp
from jax.experimental import pallas as pl
from jax.experimental.pallas import tpu as pltpu


# --------------------------- fused kernel ---------------------------

def _layernorm(x, g, b, eps):
    mu = jnp.mean(x, axis=-1, keepdims=True)
    var = jnp.mean((x - mu) ** 2, axis=-1, keepdims=True)
    return (x - mu) * jax.lax.rsqrt(var + eps) * g + b


def fused_gt2_kernel(x_in_ref, adj_ref, w_in_ref, b_in_ref, w_out_ref, b_out_ref,
                     w_proj_ref, b_proj_ref, w_beta_ref,
                     w_mlp1_ref, b_mlp1_ref, w_mlp2_ref, b_mlp2_ref, ln_ref,
                     o_ref, x_scr, agg_scr, *, heads, ch, eps):
    layer = pl.program_id(0)
    hid = heads * ch

    # lin_in only on the first grid step; x stays resident in VMEM scratch across layers.
    @pl.when(layer == 0)
    def _():
        x_scr[...] = (jnp.dot(x_in_ref[...].astype(jnp.bfloat16), w_in_ref[...],
                              preferred_element_type=jnp.float32) + b_in_ref[...])

    x = x_scr[...]                                   # x_orig for this layer (f32)
    adj = adj_ref[...].astype(jnp.float32)           # adj[i, j] = #edges j -> i (bf16 in HBM)
    # Edge mask folded into one additive bias (computed once per layer, reused by all heads).
    mask_bias = jnp.where(adj > 0.0, jnp.float32(0.0), jnp.float32(-1e30))

    # One concatenated projection matmul (bf16 x bf16 -> f32 accumulate):
    # columns = [q (pre-scaled by 1/sqrt(ch)) | k | v | skip | mha(out_proj∘v_proj)].
    xb = x.astype(jnp.bfloat16)
    proj = jnp.dot(xb, w_proj_ref[0], preferred_element_type=jnp.float32) + b_proj_ref[0]
    q = proj[:, 0 * hid:1 * hid]
    k = proj[:, 1 * hid:2 * hid]
    v = proj[:, 2 * hid:3 * hid]
    x_skip = proj[:, 3 * hid:4 * hid]
    xg = proj[:, 4 * hid:5 * hid]                    # seq-len-1 MHA output

    # PyG TransformerConv message passing: per head, per target node i, softmax over incoming
    # edges (j->i) of (q_i . k_j)/sqrt(ch); adj counts duplicate edges exactly like edge-lists.
    # Heads use contiguous ch-wide slices; each head writes its ch lanes of the agg scratch.
    # TODO(synk): for large N, tile dst rows on a leading "parallel" grid axis (online softmax
    # over src blocks) so [N,N] temporaries stay in registers and v7x's 2nd TensorCore is used.
    for h in range(heads):
        sl = slice(h * ch, (h + 1) * ch)
        qh = q[:, sl].astype(jnp.bfloat16)
        kh = k[:, sl].astype(jnp.bfloat16)
        vh = v[:, sl].astype(jnp.bfloat16)
        s = jax.lax.dot_general(qh, kh, (((1,), (1,)), ((), ())),
                                preferred_element_type=jnp.float32) + mask_bias   # [N_dst, N_src]
        m = jnp.max(s, axis=-1, keepdims=True)       # no clamp: isolated nodes handled by denom>0
        e = adj * jnp.exp(s - m)                     # adj == 0 where no edge -> no extra select
        denom = jnp.sum(e, axis=-1, keepdims=True)
        num = jnp.dot(e.astype(jnp.bfloat16), vh, preferred_element_type=jnp.float32)  # [N, ch]
        inv = pl.reciprocal(jnp.maximum(denom, jnp.float32(1e-30)), approx=True)
        agg_scr[:, sl] = jnp.where(denom > 0.0, num * inv, 0.0)   # no in-edges -> 0 (PyG scatter)

    agg = agg_scr[...]

    # Beta gate: beta = sigmoid(lin_beta([agg, x_r, agg - x_r])) folded to two row reductions
    # (lin_beta has no bias); out = beta * x_r + (1 - beta) * agg.
    wb = w_beta_ref[0]                               # [2, hid]: row0 * agg, row1 * x_r
    beta = jax.nn.sigmoid(jnp.sum(agg * wb[0:1, :], axis=-1, keepdims=True)
                          + jnp.sum(x_skip * wb[1:2, :], axis=-1, keepdims=True))
    x_local = beta * x_skip + (1.0 - beta) * agg

    ln = ln_ref[0]                                   # [6, hid] rows: g1, b1, g2, b2, g3, b3
    x_local = _layernorm(x_local + x, ln[0:1, :], ln[1:2, :], eps)   # residual + LayerNorm1
    x_global = _layernorm(xg + x, ln[2:3, :], ln[3:4, :], eps)       # residual + LayerNorm2

    xx = x_local + x_global
    hmlp = jnp.maximum(jnp.dot(xx.astype(jnp.bfloat16), w_mlp1_ref[0],
                               preferred_element_type=jnp.float32) + b_mlp1_ref[0], 0.0)
    mlp = jnp.dot(hmlp.astype(jnp.bfloat16), w_mlp2_ref[0],
                  preferred_element_type=jnp.float32) + b_mlp2_ref[0]
    x_new = _layernorm(xx + mlp, ln[4:5, :], ln[5:6, :], eps)        # x = LayerNorm3(x + MLP(x))
    x_scr[...] = x_new

    # lin_out only on the last grid step (output block is resident; written back once).
    @pl.when(layer == pl.num_programs(0) - 1)
    def _():
        o_ref[...] = (jnp.dot(x_new.astype(jnp.bfloat16), w_out_ref[...],
                              preferred_element_type=jnp.float32) + b_out_ref[...])


# --------------------------- wrapper ---------------------------

def _nbytes(a):
    return int(a.size) * jnp.dtype(a.dtype).itemsize


def graph_transformer2_forward(packed, x, adj, *, heads):
    n, _ = x.shape
    hid = packed['w_in'].shape[1]
    out_ch = packed['w_out'].shape[1]
    num_layers = packed['w_proj'].shape[0]
    assert hid % heads == 0, "hidden_channels must be divisible by heads"
    ch = hid // heads

    # Grid-constant inputs (same full block every layer step). Pallas will not re-DMA them since
    # the block index never changes.
    # TODO(synk): at large N, single-buffer adj/x (memory_space-only VMEM spec or manual DMA) to
    # avoid the 2x pipeline buffer on the biggest resident array.
    def rep2d(a):
        return pl.BlockSpec(a.shape, lambda l: (0, 0))

    def per_layer(a):   # stacked [L, ...] weights; one layer slab per grid step (double-buffered)
        return pl.BlockSpec((1,) + a.shape[1:], lambda l: (l, 0, 0))

    args = (x, adj, packed['w_in'], packed['b_in'], packed['w_out'], packed['b_out'],
            packed['w_proj'], packed['b_proj'], packed['w_beta'],
            packed['w_mlp1'], packed['b_mlp1'], packed['w_mlp2'], packed['b_mlp2'],
            packed['ln'])
    in_specs = [rep2d(x), rep2d(adj),
                rep2d(packed['w_in']), rep2d(packed['b_in']),
                rep2d(packed['w_out']), rep2d(packed['b_out']),
                per_layer(packed['w_proj']), per_layer(packed['b_proj']),
                per_layer(packed['w_beta']),
                per_layer(packed['w_mlp1']), per_layer(packed['b_mlp1']),
                per_layer(packed['w_mlp2']), per_layer(packed['b_mlp2']),
                per_layer(packed['ln'])]

    grid_spec = pltpu.PrefetchScalarGridSpec(
        num_scalar_prefetch=0,
        grid=(num_layers,),
        in_specs=in_specs,
        out_specs=pl.BlockSpec((n, out_ch), lambda l: (0, 0)),
        scratch_shapes=[pltpu.VMEM((n, hid), jnp.float32),    # x resident across layers
                        pltpu.VMEM((n, hid), jnp.float32)],   # per-head attention aggregate
    )

    # VMEM budget: constants + 2x per-layer weight slab (double-buffered) + scratches + working
    # set; clamped to <= 64 MiB so the limit is valid on v7x (64 MiB) as well as v5e/v6e (128 MiB).
    const_bytes = sum(_nbytes(a) for a in (x, adj, packed['w_in'], packed['b_in'],
                                           packed['w_out'], packed['b_out'])) * 2
    slab_bytes = sum(_nbytes(packed[k]) // packed[k].shape[0]
                     for k in ('w_proj', 'b_proj', 'w_beta', 'w_mlp1', 'b_mlp1',
                               'w_mlp2', 'b_mlp2', 'ln')) * 2
    work_bytes = (n * 5 * hid + 4 * n * n + 6 * n * hid + 2 * n * out_ch) * 4
    scratch_bytes = 2 * n * hid * 4
    est = 2 * (const_bytes + slab_bytes + work_bytes + scratch_bytes)
    vmem_limit = int(min(max(est, 32 * 1024 * 1024), 64 * 1024 * 1024))

    return pl.pallas_call(
        partial(fused_gt2_kernel, heads=heads, ch=ch, eps=1e-5),
        out_shape=jax.ShapeDtypeStruct((n, out_ch), jnp.float32),
        grid_spec=grid_spec,
        compiler_params=pltpu.CompilerParams(
            dimension_semantics=("arbitrary",),     # layers are a sequential dependence
            vmem_limit_bytes=vmem_limit),
    )(*args)


# --------------------------- params ---------------------------

def init_params(key, in_ch, hid, out_ch, heads, num_layers):
    assert hid % heads == 0, "hidden_channels must be divisible by heads"

    def lin(k, fi, fo, scale=0.1):
        kw, kb = jax.random.split(k)
        return {'w': jax.random.normal(kw, (fi, fo), jnp.float32) * scale,
                'b': jax.random.normal(kb, (1, fo), jnp.float32) * scale}

    def ln(f):
        return {'g': jnp.ones((1, f), jnp.float32), 'b': jnp.zeros((1, f), jnp.float32)}

    keys = jax.random.split(key, 2 + num_layers)
    params = {'lin_in': lin(keys[0], in_ch, hid),
              'lin_out': lin(keys[1], hid, out_ch),
              'layers': []}
    for i in range(num_layers):
        lk = jax.random.split(keys[2 + i], 9)
        params['layers'].append({
            # TransformerConv(hidden, hidden//heads, heads, beta=True)
            'q': lin(lk[0], hid, hid), 'k': lin(lk[1], hid, hid), 'v': lin(lk[2], hid, hid),
            'skip': lin(lk[3], hid, hid),
            'beta_w': jax.random.normal(lk[4], (3 * hid, 1), jnp.float32) * 0.1,  # bias=False
            # nn.MultiheadAttention: only V-projection and out_proj matter for seq-len-1
            'mha_v': lin(lk[5], hid, hid), 'mha_o': lin(lk[6], hid, hid),
            'mlp1': lin(lk[7], hid, hid), 'mlp2': lin(lk[8], hid, hid),
            'ln1': ln(hid), 'ln2': ln(hid), 'ln3': ln(hid),
        })
    return params


def prepare_params(params, heads):
    """One-time packing of per-layer weights into stacked, kernel-friendly arrays.

    - q/k/v/skip and the seq-len-1 MHA (out_proj(v_proj(x)) == x @ (Wv@Wo) + (bv@Wo + bo))
      are concatenated into one [hid, 5*hid] projection; the 1/sqrt(ch) attention scale is
      folded into the q columns.
    - lin_beta [3*hid,1] is folded: [agg, xr, agg-xr]@[w1;w2;w3] = agg@(w1+w3) + xr@(w2-w3).
    - LayerNorm gains/biases stacked into one [6, hid] slab per layer.
    - Matmul weights (w_in/w_out/w_proj/w_mlp*) are stored in bf16 (MXU operands); biases,
      beta weights and LayerNorm params stay f32 (VPU/EUP math stays f32).
    NOTE: for production sizes pick hid a multiple of 256 (v6e/v7x) or 128 (v5e) so the proj
    slices are lane-tile aligned.
    """
    hid = params['lin_in']['w'].shape[1]
    assert hid % heads == 0
    scale = 1.0 / math.sqrt(hid // heads)
    w_proj, b_proj, w_beta, w1, b1, w2, b2, lns = [], [], [], [], [], [], [], []
    for p in params['layers']:
        w_mha = p['mha_v']['w'] @ p['mha_o']['w']
        b_mha = p['mha_v']['b'] @ p['mha_o']['w'] + p['mha_o']['b']
        w_proj.append(jnp.concatenate([p['q']['w'] * scale, p['k']['w'], p['v']['w'],
                                       p['skip']['w'], w_mha], axis=1))
        b_proj.append(jnp.concatenate([p['q']['b'] * scale, p['k']['b'], p['v']['b'],
                                       p['skip']['b'], b_mha], axis=1))
        wb = p['beta_w']
        wb1, wb2, wb3 = wb[:hid], wb[hid:2 * hid], wb[2 * hid:]
        w_beta.append(jnp.stack([(wb1 + wb3)[:, 0], (wb2 - wb3)[:, 0]], axis=0))   # [2, hid]
        w1.append(p['mlp1']['w']); b1.append(p['mlp1']['b'])
        w2.append(p['mlp2']['w']); b2.append(p['mlp2']['b'])
        lns.append(jnp.concatenate([p['ln1']['g'], p['ln1']['b'],
                                    p['ln2']['g'], p['ln2']['b'],
                                    p['ln3']['g'], p['ln3']['b']], axis=0))        # [6, hid]
    return {
        'w_in': params['lin_in']['w'].astype(jnp.bfloat16), 'b_in': params['lin_in']['b'],
        'w_out': params['lin_out']['w'].astype(jnp.bfloat16), 'b_out': params['lin_out']['b'],
        'w_proj': jnp.stack(w_proj).astype(jnp.bfloat16),
        'b_proj': jnp.stack(b_proj),
        'w_beta': jnp.stack(w_beta),
        'w_mlp1': jnp.stack(w1).astype(jnp.bfloat16), 'b_mlp1': jnp.stack(b1),
        'w_mlp2': jnp.stack(w2).astype(jnp.bfloat16), 'b_mlp2': jnp.stack(b2),
        'ln': jnp.stack(lns),
    }


# --------------------------- main ---------------------------

if __name__ == "__main__":
    key = jax.random.PRNGKey(0)
    N, E = 16, 48                              # nodes, directed edges
    in_ch, hid, out_ch, heads, num_layers = 8, 32, 8, 4, 2

    k_x, k_src, k_dst, k_p = jax.random.split(key, 4)
    x = jax.random.normal(k_x, (N, in_ch), jnp.float32)
    src = jax.random.randint(k_src, (E,), 0, N)
    dst = jax.random.randint(k_dst, (E,), 0, N)
    edge_index = jnp.stack([src, dst])         # [2, E], row0 = source j, row1 = target i

    # glue: edge_index -> dense adjacency count matrix adj[i, j] = #edges j -> i, stored bf16
    # (small integer counts are exact in bf16; halves adj HBM traffic / VMEM footprint).
    # TODO(synk): edge scatter stays in plain JAX; the softmax/aggregation hot path is in-kernel.
    adj = jnp.zeros((N, N), jnp.float32).at[dst, src].add(1.0).astype(jnp.bfloat16)

    params = init_params(k_p, in_ch, hid, out_ch, heads, num_layers)
    packed = prepare_params(params, heads)

    out = graph_transformer2_forward(packed, x, adj, heads=heads)
    out = jax.block_until_ready(out)

    assert out.shape == (N, out_ch)
    assert bool(jnp.all(jnp.isfinite(out)))
    print("KERNEL_OK")
</pallas_src>

<mosaic_0001>
module attributes {stable_mosaic.version = 11 : i64} {
  func.func @fused_gt2_kernel(%arg0: i32, %arg1: memref<16x8xf32, #tpu.memory_space<vmem>>, %arg2: memref<16x16xbf16, #tpu.memory_space<vmem>>, %arg3: memref<8x32xbf16, #tpu.memory_space<vmem>>, %arg4: memref<1x32xf32, #tpu.memory_space<vmem>>, %arg5: memref<32x8xbf16, #tpu.memory_space<vmem>>, %arg6: memref<1x8xf32, #tpu.memory_space<vmem>>, %arg7: memref<1x32x160xbf16, #tpu.memory_space<vmem>>, %arg8: memref<1x1x160xf32, #tpu.memory_space<vmem>>, %arg9: memref<1x2x32xf32, #tpu.memory_space<vmem>>, %arg10: memref<1x32x32xbf16, #tpu.memory_space<vmem>>, %arg11: memref<1x1x32xf32, #tpu.memory_space<vmem>>, %arg12: memref<1x32x32xbf16, #tpu.memory_space<vmem>>, %arg13: memref<1x1x32xf32, #tpu.memory_space<vmem>>, %arg14: memref<1x6x32xf32, #tpu.memory_space<vmem>>, %arg15: memref<16x8xf32, #tpu.memory_space<vmem>>, %arg16: memref<16x32xf32, #tpu.memory_space<vmem>>, %arg17: memref<16x32xf32, #tpu.memory_space<vmem>>) attributes {dimension_semantics = [#tpu.dimension_semantics<arbitrary>], iteration_bounds = array<i64: 2>, scalar_prefetch = 0 : i64, scratch_operands = 2 : i64, tpu.core_type = #tpu.core_type<tc>, window_params = [{pipeline_mode = #tpu.pipeline_mode<synchronous>, transform_indices = @transform_0, window_bounds = array<i64: 16, 8>}, {pipeline_mode = #tpu.pipeline_mode<synchronous>, transform_indices = @transform_1, window_bounds = array<i64: 16, 16>}, {pipeline_mode = #tpu.pipeline_mode<synchronous>, transform_indices = @transform_2, window_bounds = array<i64: 8, 32>}, {pipeline_mode = #tpu.pipeline_mode<synchronous>, transform_indices = @transform_3, window_bounds = array<i64: 1, 32>}, {pipeline_mode = #tpu.pipeline_mode<synchronous>, transform_indices = @transform_4, window_bounds = array<i64: 32, 8>}, {pipeline_mode = #tpu.pipeline_mode<synchronous>, transform_indices = @transform_5, window_bounds = array<i64: 1, 8>}, {transform_indices = @transform_6, window_bounds = array<i64: 1, 32, 160>}, {transform_indices = @transform_7, window_bounds = array<i64: 1, 1, 160>}, {transform_indices = @transform_8, window_bounds = array<i64: 1, 2, 32>}, {transform_indices = @transform_9, window_bounds = array<i64: 1, 32, 32>}, {transform_indices = @transform_10, window_bounds = array<i64: 1, 1, 32>}, {transform_indices = @transform_11, window_bounds = array<i64: 1, 32, 32>}, {transform_indices = @transform_12, window_bounds = array<i64: 1, 1, 32>}, {transform_indices = @transform_13, window_bounds = array<i64: 1, 6, 32>}, {pipeline_mode = #tpu.pipeline_mode<synchronous>, transform_indices = @transform_14, window_bounds = array<i64: 16, 8>}]} {
    %c0_i32 = arith.constant 0 : i32
    %0 = arith.cmpi eq, %arg0, %c0_i32 : i32
    %1 = arith.extui %0 : i1 to i32
    %c0_i32_0 = arith.constant 0 : i32
    %2 = arith.cmpi ne, %1, %c0_i32_0 : i32
    scf.if %2 {
      %c0_91 = arith.constant 0 : index
      %c0_92 = arith.constant 0 : index
      %270 = vector.load %arg1[%c0_91, %c0_92] : memref<16x8xf32, #tpu.memory_space<vmem>>, vector<16x8xf32>
      %271 = arith.truncf %270 : vector<16x8xf32> to vector<16x8xbf16>
      %c0_93 = arith.constant 0 : index
      %c0_94 = arith.constant 0 : index
      %272 = vector.load %arg3[%c0_93, %c0_94] : memref<8x32xbf16, #tpu.memory_space<vmem>>, vector<8x32xbf16>
      %cst_95 = arith.constant dense<0.000000e+00> : vector<16x32xf32>
      %273 = tpu.matmul %271, %272, %cst_95 {dimension_numbers = #tpu.dot_dimension_numbers<[1], [0], [0], [1], [0, 0, 1, 1], [], []>} : vector<16x8xbf16>, vector<8x32xbf16>, vector<16x32xf32> -> vector<16x32xf32>
      %c0_96 = arith.constant 0 : index
      %c0_97 = arith.constant 0 : index
      %274 = vector.load %arg4[%c0_96, %c0_97] : memref<1x32xf32, #tpu.memory_space<vmem>>, vector<1x32xf32>
      %275 = vector.broadcast %274 : vector<1x32xf32> to vector<16x32xf32>
      %276 = arith.addf %273, %275 : vector<16x32xf32>
      %c0_98 = arith.constant 0 : index
      %c0_99 = arith.constant 0 : index
      %277 = vector.load %arg16[%c0_98, %c0_99] : memref<16x32xf32, #tpu.memory_space<vmem>>, vector<16x32xf32>
      tpu.vector_store %arg16[%c0_98, %c0_99], %276 {strides = array<i32>} : memref<16x32xf32, #tpu.memory_space<vmem>>, vector<16x32xf32>,
    } else {
    }
    %c0 = arith.constant 0 : index
    %c0_1 = arith.constant 0 : index
    %3 = vector.load %arg16[%c0, %c0_1] : memref<16x32xf32, #tpu.memory_space<vmem>>, vector<16x32xf32>
    %c0_2 = arith.constant 0 : index
    %c0_3 = arith.constant 0 : index
    %4 = vector.load %arg2[%c0_2, %c0_3] : memref<16x16xbf16, #tpu.memory_space<vmem>>, vector<16x16xbf16>
    %5 = arith.extf %4 : vector<16x16xbf16> to vector<16x16xf32>
    %cst = arith.constant 0.000000e+00 : f32
    %6 = vector.broadcast %cst : f32 to vector<16x16xf32>
    %7 = arith.cmpf ogt, %5, %6 : vector<16x16xf32>
    %cst_4 = arith.constant 0.000000e+00 : f32
    %cst_5 = arith.constant -1.000000e+30 : f32
    %8 = vector.broadcast %cst_4 : f32 to vector<16x16xf32>
    %9 = vector.broadcast %cst_5 : f32 to vector<16x16xf32>
    %10 = arith.select %7, %8, %9 : vector<16x16xi1>, vector<16x16xf32>
    %11 = arith.truncf %3 : vector<16x32xf32> to vector<16x32xbf16>
    %c0_6 = arith.constant 0 : index
    %c0_7 = arith.constant 0 : index
    %c0_8 = arith.constant 0 : index
    %12 = vector.load %arg7[%c0_6, %c0_7, %c0_8] : memref<1x32x160xbf16, #tpu.memory_space<vmem>>, vector<1x32x160xbf16>
    %13 = vector.shape_cast %12 : vector<1x32x160xbf16> to vector<32x160xbf16>
    %cst_9 = arith.constant dense<0.000000e+00> : vector<16x160xf32>
    %14 = tpu.matmul %11, %13, %cst_9 {dimension_numbers = #tpu.dot_dimension_numbers<[1], [0], [0], [1], [0, 0, 1, 1], [], []>} : vector<16x32xbf16>, vector<32x160xbf16>, vector<16x160xf32> -> vector<16x160xf32>
    %c0_10 = arith.constant 0 : index
    %c0_11 = arith.constant 0 : index
    %c0_12 = arith.constant 0 : index
    %15 = vector.load %arg8[%c0_10, %c0_11, %c0_12] : memref<1x1x160xf32, #tpu.memory_space<vmem>>, vector<1x1x160xf32>
    %16 = vector.shape_cast %15 : vector<1x1x160xf32> to vector<1x160xf32>
    %17 = vector.broadcast %16 : vector<1x160xf32> to vector<16x160xf32>
    %18 = arith.addf %14, %17 : vector<16x160xf32>
    %19 = vector.extract_strided_slice %18 {offsets = [0, 0], sizes = [16, 32], strides = [1, 1]} : vector<16x160xf32> to vector<16x32xf32>
    %20 = vector.extract_strided_slice %18 {offsets = [0, 32], sizes = [16, 32], strides = [1, 1]} : vector<16x160xf32> to vector<16x32xf32>
    %21 = vector.extract_strided_slice %18 {offsets = [0, 64], sizes = [16, 32], strides = [1, 1]} : vector<16x160xf32> to vector<16x32xf32>
    %22 = vector.extract_strided_slice %18 {offsets = [0, 96], sizes = [16, 32], strides = [1, 1]} : vector<16x160xf32> to vector<16x32xf32>
    %23 = vector.extract_strided_slice %18 {offsets = [0, 128], sizes = [16, 32], strides = [1, 1]} : vector<16x160xf32> to vector<16x32xf32>
    %24 = vector.extract_strided_slice %19 {offsets = [0, 0], sizes = [16, 8], strides = [1, 1]} : vector<16x32xf32> to vector<16x8xf32>
    %25 = arith.truncf %24 : vector<16x8xf32> to vector<16x8xbf16>
    %26 = vector.extract_strided_slice %20 {offsets = [0, 0], sizes = [16, 8], strides = [1, 1]} : vector<16x32xf32> to vector<16x8xf32>
    %27 = arith.truncf %26 : vector<16x8xf32> to vector<16x8xbf16>
    %28 = vector.extract_strided_slice %21 {offsets = [0, 0], sizes = [16, 8], strides = [1, 1]} : vector<16x32xf32> to vector<16x8xf32>
    %29 = arith.truncf %28 : vector<16x8xf32> to vector<16x8xbf16>
    %cst_13 = arith.constant dense<0.000000e+00> : vector<16x16xf32>
    %30 = tpu.matmul %25, %27, %cst_13 {dimension_numbers = #tpu.dot_dimension_numbers<[1], [1], [0], [0], [0, 0, 1, 0], [], []>} : vector<16x8xbf16>, vector<16x8xbf16>, vector<16x16xf32> -> vector<16x16xf32>
    %31 = arith.addf %30, %10 : vector<16x16xf32>
    %cst_14 = arith.constant dense<0xFF800000> : vector<16xf32>
    %32 = vector.multi_reduction <maximumf>, %31, %cst_14 [1] : vector<16x16xf32> to vector<16xf32>
    %33 = vector.shape_cast %32 : vector<16xf32> to vector<16x1xf32>
    %34 = vector.broadcast %33 : vector<16x1xf32> to vector<16x16xf32>
    %35 = arith.subf %31, %34 : vector<16x16xf32>
    %36 = math.exp %35 : vector<16x16xf32>
    %37 = arith.mulf %5, %36 : vector<16x16xf32>
    %cst_15 = arith.constant dense<0.000000e+00> : vector<16xf32>
    %38 = vector.multi_reduction <add>, %37, %cst_15 [1] : vector<16x16xf32> to vector<16xf32>
    %39 = vector.shape_cast %38 : vector<16xf32> to vector<16x1xf32>
    %40 = arith.truncf %37 : vector<16x16xf32> to vector<16x16xbf16>
    %cst_16 = arith.constant dense<0.000000e+00> : vector<16x8xf32>
    %41 = tpu.matmul %40, %29, %cst_16 {dimension_numbers = #tpu.dot_dimension_numbers<[1], [0], [0], [1], [0, 0, 1, 1], [], []>} : vector<16x16xbf16>, vector<16x8xbf16>, vector<16x8xf32> -> vector<16x8xf32>
    %cst_17 = arith.constant 1.000000e-30 : f32
    %42 = vector.broadcast %cst_17 : f32 to vector<16x1xf32>
    %43 = arith.maximumf %39, %42 : vector<16x1xf32>
    %44 = tpu.reciprocal %43 {approx = true} : vector<16x1xf32> -> vector<16x1xf32>
    %cst_18 = arith.constant 0.000000e+00 : f32
    %45 = vector.broadcast %cst_18 : f32 to vector<16x1xf32>
    %46 = arith.cmpf ogt, %39, %45 : vector<16x1xf32>
    %47 = vector.broadcast %44 : vector<16x1xf32> to vector<16x8xf32>
    %48 = arith.mulf %41, %47 : vector<16x8xf32>
    %cst_19 = arith.constant 0.000000e+00 : f32
    %49 = vector.shape_cast %46 : vector<16x1xi1> to vector<16x1xi1>
    %50 = vector.broadcast %49 : vector<16x1xi1> to vector<16x8xi1>
    %51 = vector.broadcast %cst_19 : f32 to vector<16x8xf32>
    %52 = arith.select %50, %48, %51 : vector<16x8xi1>, vector<16x8xf32>
    %c0_20 = arith.constant 0 : index
    %c0_21 = arith.constant 0 : index
    %53 = vector.load %arg17[%c0_20, %c0_21] : memref<16x32xf32, #tpu.memory_space<vmem>>, vector<16x8xf32>
    tpu.vector_store %arg17[%c0_20, %c0_21], %52 {strides = array<i32>} : memref<16x32xf32, #tpu.memory_space<vmem>>, vector<16x8xf32>,
    %54 = vector.extract_strided_slice %19 {offsets = [0, 8], sizes = [16, 8], strides = [1, 1]} : vector<16x32xf32> to vector<16x8xf32>
    %55 = arith.truncf %54 : vector<16x8xf32> to vector<16x8xbf16>
    %56 = vector.extract_strided_slice %20 {offsets = [0, 8], sizes = [16, 8], strides = [1, 1]} : vector<16x32xf32> to vector<16x8xf32>
    %57 = arith.truncf %56 : vector<16x8xf32> to vector<16x8xbf16>
    %58 = vector.extract_strided_slice %21 {offsets = [0, 8], sizes = [16, 8], strides = [1, 1]} : vector<16x32xf32> to vector<16x8xf32>
    %59 = arith.truncf %58 : vector<16x8xf32> to vector<16x8xbf16>
    %cst_22 = arith.constant dense<0.000000e+00> : vector<16x16xf32>
    %60 = tpu.matmul %55, %57, %cst_22 {dimension_numbers = #tpu.dot_dimension_numbers<[1], [1], [0], [0], [0, 0, 1, 0], [], []>} : vector<16x8xbf16>, vector<16x8xbf16>, vector<16x16xf32> -> vector<16x16xf32>
    %61 = arith.addf %60, %10 : vector<16x16xf32>
    %cst_23 = arith.constant dense<0xFF800000> : vector<16xf32>
    %62 = vector.multi_reduction <maximumf>, %61, %cst_23 [1] : vector<16x16xf32> to vector<16xf32>
    %63 = vector.shape_cast %62 : vector<16xf32> to vector<16x1xf32>
    %64 = vector.broadcast %63 : vector<16x1xf32> to vector<16x16xf32>
    %65 = arith.subf %61, %64 : vector<16x16xf32>
    %66 = math.exp %65 : vector<16x16xf32>
    %67 = arith.mulf %5, %66 : vector<16x16xf32>
    %cst_24 = arith.constant dense<0.000000e+00> : vector<16xf32>
    %68 = vector.multi_reduction <add>, %67, %cst_24 [1] : vector<16x16xf32> to vector<16xf32>
    %69 = vector.shape_cast %68 : vector<16xf32> to vector<16x1xf32>
    %70 = arith.truncf %67 : vector<16x16xf32> to vector<16x16xbf16>
    %cst_25 = arith.constant dense<0.000000e+00> : vector<16x8xf32>
    %71 = tpu.matmul %70, %59, %cst_25 {dimension_numbers = #tpu.dot_dimension_numbers<[1], [0], [0], [1], [0, 0, 1, 1], [], []>} : vector<16x16xbf16>, vector<16x8xbf16>, vector<16x8xf32> -> vector<16x8xf32>
    %cst_26 = arith.constant 1.000000e-30 : f32
    %72 = vector.broadcast %cst_26 : f32 to vector<16x1xf32>
    %73 = arith.maximumf %69, %72 : vector<16x1xf32>
    %74 = tpu.reciprocal %73 {approx = true} : vector<16x1xf32> -> vector<16x1xf32>
    %cst_27 = arith.constant 0.000000e+00 : f32
    %75 = vector.broadcast %cst_27 : f32 to vector<16x1xf32>
    %76 = arith.cmpf ogt, %69, %75 : vector<16x1xf32>
    %77 = vector.broadcast %74 : vector<16x1xf32> to vector<16x8xf32>
    %78 = arith.mulf %71, %77 : vector<16x8xf32>
    %cst_28 = arith.constant 0.000000e+00 : f32
    %79 = vector.shape_cast %76 : vector<16x1xi1> to vector<16x1xi1>
    %80 = vector.broadcast %79 : vector<16x1xi1> to vector<16x8xi1>
    %81 = vector.broadcast %cst_28 : f32 to vector<16x8xf32>
    %82 = arith.select %80, %78, %81 : vector<16x8xi1>, vector<16x8xf32>
    %c0_29 = arith.constant 0 : index
    %c8 = arith.constant 8 : index
    %83 = vector.load %arg17[%c0_29, %c8] : memref<16x32xf32, #tpu.memory_space<vmem>>, vector<16x8xf32>
    tpu.vector_store %arg17[%c0_29, %c8], %82 {strides = array<i32>} : memref<16x32xf32, #tpu.memory_space<vmem>>, vector<16x8xf32>,
    %84 = vector.extract_strided_slice %19 {offsets = [0, 16], sizes = [16, 8], strides = [1, 1]} : vector<16x32xf32> to vector<16x8xf32>
    %85 = arith.truncf %84 : vector<16x8xf32> to vector<16x8xbf16>
    %86 = vector.extract_strided_slice %20 {offsets = [0, 16], sizes = [16, 8], strides = [1, 1]} : vector<16x32xf32> to vector<16x8xf32>
    %87 = arith.truncf %86 : vector<16x8xf32> to vector<16x8xbf16>
    %88 = vector.extract_strided_slice %21 {offsets = [0, 16], sizes = [16, 8], strides = [1, 1]} : vector<16x32xf32> to vector<16x8xf32>
    %89 = arith.truncf %88 : vector<16x8xf32> to vector<16x8xbf16>
    %cst_30 = arith.constant dense<0.000000e+00> : vector<16x16xf32>
    %90 = tpu.matmul %85, %87, %cst_30 {dimension_numbers = #tpu.dot_dimension_numbers<[1], [1], [0], [0], [0, 0, 1, 0], [], []>} : vector<16x8xbf16>, vector<16x8xbf16>, vector<16x16xf32> -> vector<16x16xf32>
    %91 = arith.addf %90, %10 : vector<16x16xf32>
    %cst_31 = arith.constant dense<0xFF800000> : vector<16xf32>
    %92 = vector.multi_reduction <maximumf>, %91, %cst_31 [1] : vector<16x16xf32> to vector<16xf32>
    %93 = vector.shape_cast %92 : vector<16xf32> to vector<16x1xf32>
    %94 = vector.broadcast %93 : vector<16x1xf32> to vector<16x16xf32>
    %95 = arith.subf %91, %94 : vector<16x16xf32>
    %96 = math.exp %95 : vector<16x16xf32>
    %97 = arith.mulf %5, %96 : vector<16x16xf32>
    %cst_32 = arith.constant dense<0.000000e+00> : vector<16xf32>
    %98 = vector.multi_reduction <add>, %97, %cst_32 [1] : vector<16x16xf32> to vector<16xf32>
    %99 = vector.shape_cast %98 : vector<16xf32> to vector<16x1xf32>
    %100 = arith.truncf %97 : vector<16x16xf32> to vector<16x16xbf16>
    %cst_33 = arith.constant dense<0.000000e+00> : vector<16x8xf32>
    %101 = tpu.matmul %100, %89, %cst_33 {dimension_numbers = #tpu.dot_dimension_numbers<[1], [0], [0], [1], [0, 0, 1, 1], [], []>} : vector<16x16xbf16>, vector<16x8xbf16>, vector<16x8xf32> -> vector<16x8xf32>
    %cst_34 = arith.constant 1.000000e-30 : f32
    %102 = vector.broadcast %cst_34 : f32 to vector<16x1xf32>
    %103 = arith.maximumf %99, %102 : vector<16x1xf32>
    %104 = tpu.reciprocal %103 {approx = true} : vector<16x1xf32> -> vector<16x1xf32>
    %cst_35 = arith.constant 0.000000e+00 : f32
    %105 = vector.broadcast %cst_35 : f32 to vector<16x1xf32>
    %106 = arith.cmpf ogt, %99, %105 : vector<16x1xf32>
    %107 = vector.broadcast %104 : vector<16x1xf32> to vector<16x8xf32>
    %108 = arith.mulf %101, %107 : vector<16x8xf32>
    %cst_36 = arith.constant 0.000000e+00 : f32
    %109 = vector.shape_cast %106 : vector<16x1xi1> to vector<16x1xi1>
    %110 = vector.broadcast %109 : vector<16x1xi1> to vector<16x8xi1>
    %111 = vector.broadcast %cst_36 : f32 to vector<16x8xf32>
    %112 = arith.select %110, %108, %111 : vector<16x8xi1>, vector<16x8xf32>
    %c0_37 = arith.constant 0 : index
    %c16 = arith.constant 16 : index
    %113 = vector.load %arg17[%c0_37, %c16] : memref<16x32xf32, #tpu.memory_space<vmem>>, vector<16x8xf32>
    tpu.vector_store %arg17[%c0_37, %c16], %112 {strides = array<i32>} : memref<16x32xf32, #tpu.memory_space<vmem>>, vector<16x8xf32>,
    %114 = vector.extract_strided_slice %19 {offsets = [0, 24], sizes = [16, 8], strides = [1, 1]} : vector<16x32xf32> to vector<16x8xf32>
    %115 = arith.truncf %114 : vector<16x8xf32> to vector<16x8xbf16>
    %116 = vector.extract_strided_slice %20 {offsets = [0, 24], sizes = [16, 8], strides = [1, 1]} : vector<16x32xf32> to vector<16x8xf32>
    %117 = arith.truncf %116 : vector<16x8xf32> to vector<16x8xbf16>
    %118 = vector.extract_strided_slice %21 {offsets = [0, 24], sizes = [16, 8], strides = [1, 1]} : vector<16x32xf32> to vector<16x8xf32>
    %119 = arith.truncf %118 : vector<16x8xf32> to vector<16x8xbf16>
    %cst_38 = arith.constant dense<0.000000e+00> : vector<16x16xf32>
    %120 = tpu.matmul %115, %117, %cst_38 {dimension_numbers = #tpu.dot_dimension_numbers<[1], [1], [0], [0], [0, 0, 1, 0], [], []>} : vector<16x8xbf16>, vector<16x8xbf16>, vector<16x16xf32> -> vector<16x16xf32>
    %121 = arith.addf %120, %10 : vector<16x16xf32>
    %cst_39 = arith.constant dense<0xFF800000> : vector<16xf32>
    %122 = vector.multi_reduction <maximumf>, %121, %cst_39 [1] : vector<16x16xf32> to vector<16xf32>
    %123 = vector.shape_cast %122 : vector<16xf32> to vector<16x1xf32>
    %124 = vector.broadcast %123 : vector<16x1xf32> to vector<16x16xf32>
    %125 = arith.subf %121, %124 : vector<16x16xf32>
    %126 = math.exp %125 : vector<16x16xf32>
    %127 = arith.mulf %5, %126 : vector<16x16xf32>
    %cst_40 = arith.constant dense<0.000000e+00> : vector<16xf32>
    %128 = vector.multi_reduction <add>, %127, %cst_40 [1] : vector<16x16xf32> to vector<16xf32>
    %129 = vector.shape_cast %128 : vector<16xf32> to vector<16x1xf32>
    %130 = arith.truncf %127 : vector<16x16xf32> to vector<16x16xbf16>
    %cst_41 = arith.constant dense<0.000000e+00> : vector<16x8xf32>
    %131 = tpu.matmul %130, %119, %cst_41 {dimension_numbers = #tpu.dot_dimension_numbers<[1], [0], [0], [1], [0, 0, 1, 1], [], []>} : vector<16x16xbf16>, vector<16x8xbf16>, vector<16x8xf32> -> vector<16x8xf32>
    %cst_42 = arith.constant 1.000000e-30 : f32
    %132 = vector.broadcast %cst_42 : f32 to vector<16x1xf32>
    %133 = arith.maximumf %129, %132 : vector<16x1xf32>
    %134 = tpu.reciprocal %133 {approx = true} : vector<16x1xf32> -> vector<16x1xf32>
    %cst_43 = arith.constant 0.000000e+00 : f32
    %135 = vector.broadcast %cst_43 : f32 to vector<16x1xf32>
    %136 = arith.cmpf ogt, %129, %135 : vector<16x1xf32>
    %137 = vector.broadcast %134 : vector<16x1xf32> to vector<16x8xf32>
    %138 = arith.mulf %131, %137 : vector<16x8xf32>
    %cst_44 = arith.constant 0.000000e+00 : f32
    %139 = vector.shape_cast %136 : vector<16x1xi1> to vector<16x1xi1>
    %140 = vector.broadcast %139 : vector<16x1xi1> to vector<16x8xi1>
    %141 = vector.broadcast %cst_44 : f32 to vector<16x8xf32>
    %142 = arith.select %140, %138, %141 : vector<16x8xi1>, vector<16x8xf32>
    %c0_45 = arith.constant 0 : index
    %c24 = arith.constant 24 : index
    %143 = vector.load %arg17[%c0_45, %c24] : memref<16x32xf32, #tpu.memory_space<vmem>>, vector<16x8xf32>
    tpu.vector_store %arg17[%c0_45, %c24], %142 {strides = array<i32>} : memref<16x32xf32, #tpu.memory_space<vmem>>, vector<16x8xf32>,
    %c0_46 = arith.constant 0 : index
    %c0_47 = arith.constant 0 : index
    %144 = vector.load %arg17[%c0_46, %c0_47] : memref<16x32xf32, #tpu.memory_space<vmem>>, vector<16x32xf32>
    %c0_48 = arith.constant 0 : index
    %c0_49 = arith.constant 0 : index
    %c0_50 = arith.constant 0 : index
    %145 = vector.load %arg9[%c0_48, %c0_49, %c0_50] : memref<1x2x32xf32, #tpu.memory_space<vmem>>, vector<1x2x32xf32>
    %146 = vector.shape_cast %145 : vector<1x2x32xf32> to vector<2x32xf32>
    %147 = vector.extract_strided_slice %146 {offsets = [0, 0], sizes = [1, 32], strides = [1, 1]} : vector<2x32xf32> to vector<1x32xf32>
    %148 = vector.broadcast %147 : vector<1x32xf32> to vector<16x32xf32>
    %149 = arith.mulf %144, %148 : vector<16x32xf32>
    %cst_51 = arith.constant dense<0.000000e+00> : vector<16xf32>
    %150 = vector.multi_reduction <add>, %149, %cst_51 [1] : vector<16x32xf32> to vector<16xf32>
    %151 = vector.shape_cast %150 : vector<16xf32> to vector<16x1xf32>
    %152 = vector.extract_strided_slice %146 {offsets = [1, 0], sizes = [1, 32], strides = [1, 1]} : vector<2x32xf32> to vector<1x32xf32>
    %153 = vector.broadcast %152 : vector<1x32xf32> to vector<16x32xf32>
    %154 = arith.mulf %22, %153 : vector<16x32xf32>
    %cst_52 = arith.constant dense<0.000000e+00> : vector<16xf32>
    %155 = vector.multi_reduction <add>, %154, %cst_52 [1] : vector<16x32xf32> to vector<16xf32>
    %156 = vector.shape_cast %155 : vector<16xf32> to vector<16x1xf32>
    %157 = arith.addf %151, %156 : vector<16x1xf32>
    %158 = arith.negf %157 : vector<16x1xf32>
    %159 = math.exp %158 : vector<16x1xf32>
    %cst_53 = arith.constant 1.000000e+00 : f32
    %160 = vector.broadcast %cst_53 : f32 to vector<16x1xf32>
    %161 = arith.addf %160, %159 : vector<16x1xf32>
    %162 = arith.divf %160, %161 : vector<16x1xf32>
    %163 = vector.broadcast %162 : vector<16x1xf32> to vector<16x32xf32>
    %164 = arith.mulf %163, %22 : vector<16x32xf32>
    %cst_54 = arith.constant 1.000000e+00 : f32
    %165 = vector.broadcast %cst_54 : f32 to vector<16x1xf32>
    %166 = arith.subf %165, %162 : vector<16x1xf32>
    %167 = vector.broadcast %166 : vector<16x1xf32> to vector<16x32xf32>
    %168 = arith.mulf %167, %144 : vector<16x32xf32>
    %169 = arith.addf %164, %168 : vector<16x32xf32>
    %c0_55 = arith.constant 0 : index
    %c0_56 = arith.constant 0 : index
    %c0_57 = arith.constant 0 : index
    %170 = vector.load %arg14[%c0_55, %c0_56, %c0_57] : memref<1x6x32xf32, #tpu.memory_space<vmem>>, vector<1x6x32xf32>
    %171 = vector.shape_cast %170 : vector<1x6x32xf32> to vector<6x32xf32>
    %172 = arith.addf %169, %3 : vector<16x32xf32>
    %173 = vector.extract_strided_slice %171 {offsets = [0, 0], sizes = [1, 32], strides = [1, 1]} : vector<6x32xf32> to vector<1x32xf32>
    %174 = vector.extract_strided_slice %171 {offsets = [1, 0], sizes = [1, 32], strides = [1, 1]} : vector<6x32xf32> to vector<1x32xf32>
    %cst_58 = arith.constant dense<0.000000e+00> : vector<16xf32>
    %175 = vector.multi_reduction <add>, %172, %cst_58 [1] : vector<16x32xf32> to vector<16xf32>
    %176 = vector.shape_cast %175 : vector<16xf32> to vector<16x1xf32>
    %cst_59 = arith.constant 3.200000e+01 : f32
    %177 = vector.broadcast %cst_59 : f32 to vector<16x1xf32>
    %178 = arith.divf %176, %177 : vector<16x1xf32>
    %179 = vector.broadcast %178 : vector<16x1xf32> to vector<16x32xf32>
    %180 = arith.subf %172, %179 : vector<16x32xf32>
    %181 = arith.mulf %180, %180 : vector<16x32xf32>
    %cst_60 = arith.constant dense<0.000000e+00> : vector<16xf32>
    %182 = vector.multi_reduction <add>, %181, %cst_60 [1] : vector<16x32xf32> to vector<16xf32>
    %183 = vector.shape_cast %182 : vector<16xf32> to vector<16x1xf32>
    %cst_61 = arith.constant 3.200000e+01 : f32
    %184 = vector.broadcast %cst_61 : f32 to vector<16x1xf32>
    %185 = arith.divf %183, %184 : vector<16x1xf32>
    %186 = vector.broadcast %178 : vector<16x1xf32> to vector<16x32xf32>
    %187 = arith.subf %172, %186 : vector<16x32xf32>
    %cst_62 = arith.constant 9.99999974E-6 : f32
    %188 = vector.broadcast %cst_62 : f32 to vector<16x1xf32>
    %189 = arith.addf %185, %188 : vector<16x1xf32>
    %190 = math.rsqrt %189 : vector<16x1xf32>
    %191 = vector.broadcast %190 : vector<16x1xf32> to vector<16x32xf32>
    %192 = arith.mulf %187, %191 : vector<16x32xf32>
    %193 = vector.broadcast %173 : vector<1x32xf32> to vector<16x32xf32>
    %194 = arith.mulf %192, %193 : vector<16x32xf32>
    %195 = vector.broadcast %174 : vector<1x32xf32> to vector<16x32xf32>
    %196 = arith.addf %194, %195 : vector<16x32xf32>
    %197 = arith.addf %23, %3 : vector<16x32xf32>
    %198 = vector.extract_strided_slice %171 {offsets = [2, 0], sizes = [1, 32], strides = [1, 1]} : vector<6x32xf32> to vector<1x32xf32>
    %199 = vector.extract_strided_slice %171 {offsets = [3, 0], sizes = [1, 32], strides = [1, 1]} : vector<6x32xf32> to vector<1x32xf32>
    %cst_63 = arith.constant dense<0.000000e+00> : vector<16xf32>
    %200 = vector.multi_reduction <add>, %197, %cst_63 [1] : vector<16x32xf32> to vector<16xf32>
    %201 = vector.shape_cast %200 : vector<16xf32> to vector<16x1xf32>
    %cst_64 = arith.constant 3.200000e+01 : f32
    %202 = vector.broadcast %cst_64 : f32 to vector<16x1xf32>
    %203 = arith.divf %201, %202 : vector<16x1xf32>
    %204 = vector.broadcast %203 : vector<16x1xf32> to vector<16x32xf32>
    %205 = arith.subf %197, %204 : vector<16x32xf32>
    %206 = arith.mulf %205, %205 : vector<16x32xf32>
    %cst_65 = arith.constant dense<0.000000e+00> : vector<16xf32>
    %207 = vector.multi_reduction <add>, %206, %cst_65 [1] : vector<16x32xf32> to vector<16xf32>
    %208 = vector.shape_cast %207 : vector<16xf32> to vector<16x1xf32>
    %cst_66 = arith.constant 3.200000e+01 : f32
    %209 = vector.broadcast %cst_66 : f32 to vector<16x1xf32>
    %210 = arith.divf %208, %209 : vector<16x1xf32>
    %211 = vector.broadcast %203 : vector<16x1xf32> to vector<16x32xf32>
    %212 = arith.subf %197, %211 : vector<16x32xf32>
    %cst_67 = arith.constant 9.99999974E-6 : f32
    %213 = vector.broadcast %cst_67 : f32 to vector<16x1xf32>
    %214 = arith.addf %210, %213 : vector<16x1xf32>
    %215 = math.rsqrt %214 : vector<16x1xf32>
    %216 = vector.broadcast %215 : vector<16x1xf32> to vector<16x32xf32>
    %217 = arith.mulf %212, %216 : vector<16x32xf32>
    %218 = vector.broadcast %198 : vector<1x32xf32> to vector<16x32xf32>
    %219 = arith.mulf %217, %218 : vector<16x32xf32>
    %220 = vector.broadcast %199 : vector<1x32xf32> to vector<16x32xf32>
    %221 = arith.addf %219, %220 : vector<16x32xf32>
    %222 = arith.addf %196, %221 : vector<16x32xf32>
    %223 = arith.truncf %222 : vector<16x32xf32> to vector<16x32xbf16>
    %c0_68 = arith.constant 0 : index
    %c0_69 = arith.constant 0 : index
    %c0_70 = arith.constant 0 : index
    %224 = vector.load %arg10[%c0_68, %c0_69, %c0_70] : memref<1x32x32xbf16, #tpu.memory_space<vmem>>, vector<1x32x32xbf16>
    %225 = vector.shape_cast %224 : vector<1x32x32xbf16> to vector<32x32xbf16>
    %cst_71 = arith.constant dense<0.000000e+00> : vector<16x32xf32>
    %226 = tpu.matmul %223, %225, %cst_71 {dimension_numbers = #tpu.dot_dimension_numbers<[1], [0], [0], [1], [0, 0, 1, 1], [], []>} : vector<16x32xbf16>, vector<32x32xbf16>, vector<16x32xf32> -> vector<16x32xf32>
    %c0_72 = arith.constant 0 : index
    %c0_73 = arith.constant 0 : index
    %c0_74 = arith.constant 0 : index
    %227 = vector.load %arg11[%c0_72, %c0_73, %c0_74] : memref<1x1x32xf32, #tpu.memory_space<vmem>>, vector<1x1x32xf32>
    %228 = vector.shape_cast %227 : vector<1x1x32xf32> to vector<1x32xf32>
    %229 = vector.broadcast %228 : vector<1x32xf32> to vector<16x32xf32>
    %230 = arith.addf %226, %229 : vector<16x32xf32>
    %cst_75 = arith.constant 0.000000e+00 : f32
    %231 = vector.broadcast %cst_75 : f32 to vector<16x32xf32>
    %232 = arith.maximumf %230, %231 : vector<16x32xf32>
    %233 = arith.truncf %232 : vector<16x32xf32> to vector<16x32xbf16>
    %c0_76 = arith.constant 0 : index
    %c0_77 = arith.constant 0 : index
    %c0_78 = arith.constant 0 : index
    %234 = vector.load %arg12[%c0_76, %c0_77, %c0_78] : memref<1x32x32xbf16, #tpu.memory_space<vmem>>, vector<1x32x32xbf16>
    %235 = vector.shape_cast %234 : vector<1x32x32xbf16> to vector<32x32xbf16>
    %cst_79 = arith.constant dense<0.000000e+00> : vector<16x32xf32>
    %236 = tpu.matmul %233, %235, %cst_79 {dimension_numbers = #tpu.dot_dimension_numbers<[1], [0], [0], [1], [0, 0, 1, 1], [], []>} : vector<16x32xbf16>, vector<32x32xbf16>, vector<16x32xf32> -> vector<16x32xf32>
    %c0_80 = arith.constant 0 : index
    %c0_81 = arith.constant 0 : index
    %c0_82 = arith.constant 0 : index
    %237 = vector.load %arg13[%c0_80, %c0_81, %c0_82] : memref<1x1x32xf32, #tpu.memory_space<vmem>>, vector<1x1x32xf32>
    %238 = vector.shape_cast %237 : vector<1x1x32xf32> to vector<1x32xf32>
    %239 = vector.broadcast %238 : vector<1x32xf32> to vector<16x32xf32>
    %240 = arith.addf %236, %239 : vector<16x32xf32>
    %241 = arith.addf %222, %240 : vector<16x32xf32>
    %242 = vector.extract_strided_slice %171 {offsets = [4, 0], sizes = [1, 32], strides = [1, 1]} : vector<6x32xf32> to vector<1x32xf32>
    %243 = vector.extract_strided_slice %171 {offsets = [5, 0], sizes = [1, 32], strides = [1, 1]} : vector<6x32xf32> to vector<1x32xf32>
    %cst_83 = arith.constant dense<0.000000e+00> : vector<16xf32>
    %244 = vector.multi_reduction <add>, %241, %cst_83 [1] : vector<16x32xf32> to vector<16xf32>
    %245 = vector.shape_cast %244 : vector<16xf32> to vector<16x1xf32>
    %cst_84 = arith.constant 3.200000e+01 : f32
    %246 = vector.broadcast %cst_84 : f32 to vector<16x1xf32>
    %247 = arith.divf %245, %246 : vector<16x1xf32>
    %248 = vector.broadcast %247 : vector<16x1xf32> to vector<16x32xf32>
    %249 = arith.subf %241, %248 : vector<16x32xf32>
    %250 = arith.mulf %249, %249 : vector<16x32xf32>
    %cst_85 = arith.constant dense<0.000000e+00> : vector<16xf32>
    %251 = vector.multi_reduction <add>, %250, %cst_85 [1] : vector<16x32xf32> to vector<16xf32>
    %252 = vector.shape_cast %251 : vector<16xf32> to vector<16x1xf32>
    %cst_86 = arith.constant 3.200000e+01 : f32
    %253 = vector.broadcast %cst_86 : f32 to vector<16x1xf32>
    %254 = arith.divf %252, %253 : vector<16x1xf32>
    %255 = vector.broadcast %247 : vector<16x1xf32> to vector<16x32xf32>
    %256 = arith.subf %241, %255 : vector<16x32xf32>
    %cst_87 = arith.constant 9.99999974E-6 : f32
    %257 = vector.broadcast %cst_87 : f32 to vector<16x1xf32>
    %258 = arith.addf %254, %257 : vector<16x1xf32>
    %259 = math.rsqrt %258 : vector<16x1xf32>
    %260 = vector.broadcast %259 : vector<16x1xf32> to vector<16x32xf32>
    %261 = arith.mulf %256, %260 : vector<16x32xf32>
    %262 = vector.broadcast %242 : vector<1x32xf32> to vector<16x32xf32>
    %263 = arith.mulf %261, %262 : vector<16x32xf32>
    %264 = vector.broadcast %243 : vector<1x32xf32> to vector<16x32xf32>
    %265 = arith.addf %263, %264 : vector<16x32xf32>
    %c0_88 = arith.constant 0 : index
    %c0_89 = arith.constant 0 : index
    %266 = vector.load %arg16[%c0_88, %c0_89] : memref<16x32xf32, #tpu.memory_space<vmem>>, vector<16x32xf32>
    tpu.vector_store %arg16[%c0_88, %c0_89], %265 {strides = array<i32>} : memref<16x32xf32, #tpu.memory_space<vmem>>, vector<16x32xf32>,
    %c1_i32 = arith.constant 1 : i32
    %267 = arith.cmpi eq, %arg0, %c1_i32 : i32
    %268 = arith.extui %267 : i1 to i32
    %c0_i32_90 = arith.constant 0 : i32
    %269 = arith.cmpi ne, %268, %c0_i32_90 : i32
    scf.if %269 {
      %270 = arith.truncf %265 : vector<16x32xf32> to vector<16x32xbf16>
      %c0_91 = arith.constant 0 : index
      %c0_92 = arith.constant 0 : index
      %271 = vector.load %arg5[%c0_91, %c0_92] : memref<32x8xbf16, #tpu.memory_space<vmem>>, vector<32x8xbf16>
      %cst_93 = arith.constant dense<0.000000e+00> : vector<16x8xf32>
      %272 = tpu.matmul %270, %271, %cst_93 {dimension_numbers = #tpu.dot_dimension_numbers<[1], [0], [0], [1], [0, 0, 1, 1], [], []>} : vector<16x32xbf16>, vector<32x8xbf16>, vector<16x8xf32> -> vector<16x8xf32>
      %c0_94 = arith.constant 0 : index
      %c0_95 = arith.constant 0 : index
      %273 = vector.load %arg6[%c0_94, %c0_95] : memref<1x8xf32, #tpu.memory_space<vmem>>, vector<1x8xf32>
      %274 = vector.broadcast %273 : vector<1x8xf32> to vector<16x8xf32>
      %275 = arith.addf %272, %274 : vector<16x8xf32>
      %c0_96 = arith.constant 0 : index
      %c0_97 = arith.constant 0 : index
      %276 = vector.load %arg15[%c0_96, %c0_97] : memref<16x8xf32, #tpu.memory_space<vmem>>, vector<16x8xf32>
      tpu.vector_store %arg15[%c0_96, %c0_97], %275 {strides = array<i32>} : memref<16x8xf32, #tpu.memory_space<vmem>>, vector<16x8xf32>,
    } else {
    }
    return
  }
  func.func @transform_0(%arg0: i32) -> (i32, i32) {
    %c0_i32 = arith.constant 0 : i32
    %c0_i32_0 = arith.constant 0 : i32
    %c0_i32_1 = arith.constant 0 : i32
    return %c0_i32, %c0_i32_0 : i32, i32
  }
  func.func @transform_1(%arg0: i32) -> (i32, i32) {
    %c0_i32 = arith.constant 0 : i32
    %c0_i32_0 = arith.constant 0 : i32
    %c0_i32_1 = arith.constant 0 : i32
    return %c0_i32, %c0_i32_0 : i32, i32
  }
  func.func @transform_2(%arg0: i32) -> (i32, i32) {
    %c0_i32 = arith.constant 0 : i32
    %c0_i32_0 = arith.constant 0 : i32
    %c0_i32_1 = arith.constant 0 : i32
    return %c0_i32, %c0_i32_0 : i32, i32
  }
  func.func @transform_3(%arg0: i32) -> (i32, i32) {
    %c0_i32 = arith.constant 0 : i32
    %c0_i32_0 = arith.constant 0 : i32
    %c0_i32_1 = arith.constant 0 : i32
    return %c0_i32, %c0_i32_0 : i32, i32
  }
  func.func @transform_4(%arg0: i32) -> (i32, i32) {
    %c0_i32 = arith.constant 0 : i32
    %c0_i32_0 = arith.constant 0 : i32
    %c0_i32_1 = arith.constant 0 : i32
    return %c0_i32, %c0_i32_0 : i32, i32
  }
  func.func @transform_5(%arg0: i32) -> (i32, i32) {
    %c0_i32 = arith.constant 0 : i32
    %c0_i32_0 = arith.constant 0 : i32
    %c0_i32_1 = arith.constant 0 : i32
    return %c0_i32, %c0_i32_0 : i32, i32
  }
  func.func @transform_6(%arg0: i32) -> (i32, i32, i32) {
    %c0_i32 = arith.constant 0 : i32
    %c0_i32_0 = arith.constant 0 : i32
    %c0_i32_1 = arith.constant 0 : i32
    return %arg0, %c0_i32, %c0_i32_0 : i32, i32, i32
  }
  func.func @transform_7(%arg0: i32) -> (i32, i32, i32) {
    %c0_i32 = arith.constant 0 : i32
    %c0_i32_0 = arith.constant 0 : i32
    %c0_i32_1 = arith.constant 0 : i32
    return %arg0, %c0_i32, %c0_i32_0 : i32, i32, i32
  }
  func.func @transform_8(%arg0: i32) -> (i32, i32, i32) {
    %c0_i32 = arith.constant 0 : i32
    %c0_i32_0 = arith.constant 0 : i32
    %c0_i32_1 = arith.constant 0 : i32
    return %arg0, %c0_i32, %c0_i32_0 : i32, i32, i32
  }
  func.func @transform_9(%arg0: i32) -> (i32, i32, i32) {
    %c0_i32 = arith.constant 0 : i32
    %c0_i32_0 = arith.constant 0 : i32
    %c0_i32_1 = arith.constant 0 : i32
    return %arg0, %c0_i32, %c0_i32_0 : i32, i32, i32
  }
  func.func @transform_10(%arg0: i32) -> (i32, i32, i32) {
    %c0_i32 = arith.constant 0 : i32
    %c0_i32_0 = arith.constant 0 : i32
    %c0_i32_1 = arith.constant 0 : i32
    return %arg0, %c0_i32, %c0_i32_0 : i32, i32, i32
  }
  func.func @transform_11(%arg0: i32) -> (i32, i32, i32) {
    %c0_i32 = arith.constant 0 : i32
    %c0_i32_0 = arith.constant 0 : i32
    %c0_i32_1 = arith.constant 0 : i32
    return %arg0, %c0_i32, %c0_i32_0 : i32, i32, i32
  }
  func.func @transform_12(%arg0: i32) -> (i32, i32, i32) {
    %c0_i32 = arith.constant 0 : i32
    %c0_i32_0 = arith.constant 0 : i32
    %c0_i32_1 = arith.constant 0 : i32
    return %arg0, %c0_i32, %c0_i32_0 : i32, i32, i32
  }
  func.func @transform_13(%arg0: i32) -> (i32, i32, i32) {
    %c0_i32 = arith.constant 0 : i32
    %c0_i32_0 = arith.constant 0 : i32
    %c0_i32_1 = arith.constant 0 : i32
    return %arg0, %c0_i32, %c0_i32_0 : i32, i32, i32
  }
  func.func @transform_14(%arg0: i32) -> (i32, i32) {
    %c0_i32 = arith.constant 0 : i32
    %c0_i32_0 = arith.constant 0 : i32
    %c0_i32_1 = arith.constant 0 : i32
    return %c0_i32, %c0_i32_0 : i32, i32
  }
}

</mosaic_0001>

<llo_original>
// kernel: tpu_custom_call.1
$region0: #{tpu_custom_call.1}
  #allocation0 [shape = 'u32[]', space=smem, size = 0x4, offset = 0x4, fixed_abs, tag = 'smem constant byte address 0x4 - core index']
  #allocation1 [shape = 'u32[144,128]{1,0:T(1,128)}', space=vmem, size = 0x12000, scoped, tag = 'internal scratch']
  #allocation2 [shape = 'f32[16,32]{1,0:T(8,128)}', space=vmem, size = 0x2000, scoped, tag = 'scratch operand']
  #allocation3 [shape = 'f32[16,32]{1,0:T(8,128)}', space=vmem, size = 0x2000, scoped, tag = 'scratch operand']
  %s0 = inlined_call_operand.vmem [shape: f32[16,8], index: 0, kind: input, shape index: {}]
  %s1 = inlined_call_operand.hbm [shape: bf16[16,16], index: 1, kind: input, shape index: {}]
  %s2 = inlined_call_operand.hbm [shape: bf16[8,32], index: 2, kind: input, shape index: {}]
  %s3 = inlined_call_operand.vmem [shape: f32[1,32], index: 3, kind: input, shape index: {}]
  %s4 = inlined_call_operand.vmem [shape: bf16[32,8], index: 4, kind: input, shape index: {}]
  %s5 = inlined_call_operand.hbm [shape: f32[1,8], index: 5, kind: input, shape index: {}]
  %s6 = inlined_call_operand.vmem [shape: bf16[2,32,160], index: 6, kind: input, shape index: {}]
  %s7 = inlined_call_operand.hbm [shape: f32[2,1,160], index: 7, kind: input, shape index: {}]
  %s8 = inlined_call_operand.hbm [shape: f32[2,2,32], index: 8, kind: input, shape index: {}]
  %s9 = inlined_call_operand.vmem [shape: bf16[2,32,32], index: 9, kind: input, shape index: {}]
  %s10 = inlined_call_operand.hbm [shape: f32[2,1,32], index: 10, kind: input, shape index: {}]
  %s11 = inlined_call_operand.hbm [shape: bf16[2,32,32], index: 11, kind: input, shape index: {}]
  %s12 = inlined_call_operand.vmem [shape: f32[2,1,32], index: 12, kind: input, shape index: {}]
  %s13 = inlined_call_operand.vmem [shape: f32[2,6,32], index: 13, kind: input, shape index: {}]
  %s14 = inlined_call_operand.vmem [shape: f32[16,8], index: 14, kind: output, shape index: {}]
  %s15 = sld [smem:[#allocation0]]
  $region125: #{tpu_custom_call.1} parent=0
    _
  %s17 = ssub.s32 1, %s15
  %s18 = scalar_select 0, %s17, %s15
  $region1: #{tpu_custom_call.1} parent=0
    #allocation4 [shape = 'u8[4096]{0}', space=vmem, size = 0x1000, scoped, tag = 'input window, operand 1, single buffered']
    #allocation5 [shape = 's32[2]{0}', space=sflag, size = 0x8, scoped, tag = 'scoped memory for tpu_custom_call.1']
    #allocation6 [shape = 'u8[2048]{0}', space=vmem, size = 0x800, scoped, tag = 'input window, operand 2, single buffered']
    #allocation7 [shape = 's32[1]{0}', space=sflag, size = 0x4, scoped, tag = 'scoped memory for tpu_custom_call.1']
    #allocation8 [shape = 'u8[512]{0}', space=vmem, size = 0x400, scoped, tag = 'input window, operand 5, single buffered']
    #allocation9 [shape = 'u8[2048]{0}', space=vmem, size = 0x800, scoped, tag = 'input window, operand 7']
    #allocation10 [shape = 's32[2]{0}', space=sflag, size = 0x8, scoped, tag = 'scoped memory for tpu_custom_call.1']
    #allocation11 [shape = 'u8[2048]{0}', space=vmem, size = 0x800, scoped, tag = 'input window, operand 8']
    #allocation12 [shape = 'u8[1024]{0}', space=vmem, size = 0x400, scoped, tag = 'input window, operand 10']
    #allocation13 [shape = 's32[2]{0}', space=sflag, size = 0x8, scoped, tag = 'scoped memory for tpu_custom_call.1']
    #allocation14 [shape = 'u8[16384]{0}', space=vmem, size = 0x4000, scoped, tag = 'input window, operand 11']
    %19 = vsyncpa [#allocation5], 0
    %20 = vsyncpa [#allocation7], 0
    %21 = vsyncpa [#allocation10], 0
    %s22 = scalar_lea.sflag [#allocation10], 1
    %23 = vsyncpa %s22, 0
    %24 = vsyncpa [#allocation13], 0
    %s25 = scalar_lea.sflag [#allocation13], 1
    %26 = vsyncpa %s25, 0
    loop: start=0, step=1, limit=4
    $region2: #{tpu_custom_call.1} parent=1 // loop_pre_header
      _
    $region3: #{tpu_custom_call.1} parent=1 // loop_header
      %s28 = sphi 0, %s32
      %p29 = scmp.ge.s32.totalorder %s28, 4
      %s36 = sphi 0, %s36
      %s38 = sphi 0, %s36
      %s39 = sphi 0, %s38
      %s53 = sphi 0, %s39
      %s57 = sphi 0, %s57
      %s59 = sphi 0, %s57
      %s60 = sphi 0, %s59
      %s74 = sphi 0, %s60
      %s78 = sphi 0, %s78
      %s80 = sphi 0, %s78
      %s81 = sphi 0, %s80
      %s95 = sphi 0, %s81
      %s99 = sphi 0, %s99
      %s101 = sphi 0, %s99
      %s102 = sphi 0, %s101
      %s116 = sphi 0, %s102
      %s120 = sphi 0, %s120
      %s122 = sphi 0, %s120
      %s123 = sphi 0, %s122
      %s137 = sphi 0, %s123
      %s141 = sphi 0, %s141
      %s143 = sphi 0, %s141
      %s144 = sphi 0, %s143
      %s158 = sphi 0, %s144
      %s164 = sphi 0, %s166
      %s167 = sphi 0, %s164
      %s168 = sphi 0, %s167
      %s184 = sphi 0, %s168
      %s190 = sphi 0, %s192
      %s193 = sphi 0, %s190
      %s194 = sphi 0, %s193
      %s210 = sphi 0, %s194
      %s216 = sphi 0, %s218
      %s219 = sphi 0, %s216
      %s220 = sphi 0, %s219
      %s236 = sphi 0, %s220
      %s242 = sphi 0, %s244
      %s245 = sphi 0, %s242
      %s246 = sphi 0, %s245
      %s262 = sphi 0, %s246
      %s268 = sphi 0, %s270
      %s271 = sphi 0, %s268
      %s272 = sphi 0, %s271
      %s288 = sphi 0, %s272
      %s294 = sphi 0, %s296
      %s297 = sphi 0, %s294
      %s298 = sphi 0, %s297
      %s314 = sphi 0, %s298
      %s320 = sphi 0, %s322
      %s323 = sphi 0, %s320
      %s324 = sphi 0, %s323
      %s340 = sphi 0, %s324
      %s346 = sphi 0, %s348
      %s349 = sphi 0, %s346
      %s350 = sphi 0, %s349
      %s366 = sphi 0, %s350
      %s370 = sphi 0, %s370
      %s372 = sphi 0, %s370
      %s373 = sphi 0, %s372
      %s387 = sphi 0, %s373
    $region4: #{tpu_custom_call.1} parent=1 // loop_header_branch
      %31 = sbr.rel (%p29) target = $region8
    $region5: #{tpu_custom_call.1} parent=1 // loop_body
      %s33 = ssub.s32 %s28, 1
      %s34 = ssub.s32 %s28, 2
      %s35 = sadd.s32 %s28, 1
      %s37 = sadd.s32 %s36, 1
      %p40 = scmp.eq.s32.totalorder %s28, 1
      %p41 = scmp.ne.s32.totalorder %s36, %s38
      %p42 = scmp.eq.s32.totalorder %s28, 0
      %p43 = por %p41, %p42
      %p44 = scmp.ne.s32.totalorder %s36, %s38
      %p45 = scmp.eq.s32.totalorder %s33, 1
      %p46 = por %p44, %p45
      %p47 = scmp.ne.s32.totalorder %s38, %s39
      %p48 = scmp.eq.s32.totalorder %s33, 0
      %p49 = por %p47, %p48
      %p50 = scmp.ne.s32.totalorder %s38, %s39
      %p51 = scmp.eq.s32.totalorder %s34, 1
      %p52 = por %p50, %p51
      %p54 = scmp.ne.s32.totalorder %s39, %s53
      %p55 = scmp.eq.s32.totalorder %s34, 0
      %p56 = por %p54, %p55
      %s58 = sadd.s32 %s57, 1
      %p61 = scmp.eq.s32.totalorder %s28, 1
      %p62 = scmp.ne.s32.totalorder %s57, %s59
      %p63 = scmp.eq.s32.totalorder %s28, 0
      %p64 = por %p62, %p63
      %p65 = scmp.ne.s32.totalorder %s57, %s59
      %p66 = scmp.eq.s32.totalorder %s33, 1
      %p67 = por %p65, %p66
      %p68 = scmp.ne.s32.totalorder %s59, %s60
      %p69 = scmp.eq.s32.totalorder %s33, 0
      %p70 = por %p68, %p69
      %p71 = scmp.ne.s32.totalorder %s59, %s60
      %p72 = scmp.eq.s32.totalorder %s34, 1
      %p73 = por %p71, %p72
      %p75 = scmp.ne.s32.totalorder %s60, %s74
      %p76 = scmp.eq.s32.totalorder %s34, 0
      %p77 = por %p75, %p76
      %s79 = sadd.s32 %s78, 1
      %p82 = scmp.eq.s32.totalorder %s28, 1
      %p83 = scmp.ne.s32.totalorder %s78, %s80
      %p84 = scmp.eq.s32.totalorder %s28, 0
      %p85 = por %p83, %p84
      %p86 = scmp.ne.s32.totalorder %s78, %s80
      %p87 = scmp.eq.s32.totalorder %s33, 1
      %p88 = por %p86, %p87
      %p89 = scmp.ne.s32.totalorder %s80, %s81
      %p90 = scmp.eq.s32.totalorder %s33, 0
      %p91 = por %p89, %p90
      %p92 = scmp.ne.s32.totalorder %s80, %s81
      %p93 = scmp.eq.s32.totalorder %s34, 1
      %p94 = por %p92, %p93
      %p96 = scmp.ne.s32.totalorder %s81, %s95
      %p97 = scmp.eq.s32.totalorder %s34, 0
      %p98 = por %p96, %p97
      %s100 = sadd.s32 %s99, 1
      %p103 = scmp.eq.s32.totalorder %s28, 1
      %p104 = scmp.ne.s32.totalorder %s99, %s101
      %p105 = scmp.eq.s32.totalorder %s28, 0
      %p106 = por %p104, %p105
      %p107 = scmp.ne.s32.totalorder %s99, %s101
      %p108 = scmp.eq.s32.totalorder %s33, 1
      %p109 = por %p107, %p108
      %p110 = scmp.ne.s32.totalorder %s101, %s102
      %p111 = scmp.eq.s32.totalorder %s33, 0
      %p112 = por %p110, %p111
      %p113 = scmp.ne.s32.totalorder %s101, %s102
      %p114 = scmp.eq.s32.totalorder %s34, 1
      %p115 = por %p113, %p114
      %p117 = scmp.ne.s32.totalorder %s102, %s116
      %p118 = scmp.eq.s32.totalorder %s34, 0
      %p119 = por %p117, %p118
      %s121 = sadd.s32 %s120, 1
      %p124 = scmp.eq.s32.totalorder %s28, 1
      %p125 = scmp.ne.s32.totalorder %s120, %s122
      %p126 = scmp.eq.s32.totalorder %s28, 0
      %p127 = por %p125, %p126
      %p128 = scmp.ne.s32.totalorder %s120, %s122
      %p129 = scmp.eq.s32.totalorder %s33, 1
      %p130 = por %p128, %p129
      %p131 = scmp.ne.s32.totalorder %s122, %s123
      %p132 = scmp.eq.s32.totalorder %s33, 0
      %p133 = por %p131, %p132
      %p134 = scmp.ne.s32.totalorder %s122, %s123
      %p135 = scmp.eq.s32.totalorder %s34, 1
      %p136 = por %p134, %p135
      %p138 = scmp.ne.s32.totalorder %s123, %s137
      %p139 = scmp.eq.s32.totalorder %s34, 0
      %p140 = por %p138, %p139
      %s142 = sadd.s32 %s141, 1
      %p145 = scmp.eq.s32.totalorder %s28, 1
      %p146 = scmp.ne.s32.totalorder %s141, %s143
      %p147 = scmp.eq.s32.totalorder %s28, 0
      %p148 = por %p146, %p147
      %p149 = scmp.ne.s32.totalorder %s141, %s143
      %p150 = scmp.eq.s32.totalorder %s33, 1
      %p151 = por %p149, %p150
      %p152 = scmp.ne.s32.totalorder %s143, %s144
      %p153 = scmp.eq.s32.totalorder %s33, 0
      %p154 = por %p152, %p153
      %p155 = scmp.ne.s32.totalorder %s143, %s144
      %p156 = scmp.eq.s32.totalorder %s34, 1
      %p157 = por %p155, %p156
      %p159 = scmp.ne.s32.totalorder %s144, %s158
      %p160 = scmp.eq.s32.totalorder %s34, 0
      %p161 = por %p159, %p160
      %s162 = ssub.s32 %s28, %s35
      %p163 = scmp.eq.s32.totalorder %s162, 0
      %s165 = sadd.s32 %s164, 1
      %s166 = scalar_select %p163, %s164, %s165
      %p169 = pneg %p163
      %p170 = scmp.eq.s32.totalorder %s28, 1
      %p171 = por %p169, %p170
      %p172 = scmp.ne.s32.totalorder %s164, %s167
      %p173 = scmp.eq.s32.totalorder %s28, 0
      %p174 = por %p172, %p173
      %p175 = scmp.ne.s32.totalorder %s164, %s167
      %p176 = scmp.eq.s32.totalorder %s33, 1
      %p177 = por %p175, %p176
      %p178 = scmp.ne.s32.totalorder %s167, %s168
      %p179 = scmp.eq.s32.totalorder %s33, 0
      %p180 = por %p178, %p179
      %p181 = scmp.ne.s32.totalorder %s167, %s168
      %p182 = scmp.eq.s32.totalorder %s34, 1
      %p183 = por %p181, %p182
      %p185 = scmp.ne.s32.totalorder %s168, %s184
      %p186 = scmp.eq.s32.totalorder %s34, 0
      %p187 = por %p185, %p186
      %s188 = ssub.s32 %s28, %s35
      %p189 = scmp.eq.s32.totalorder %s188, 0
      %s191 = sadd.s32 %s190, 1
      %s192 = scalar_select %p189, %s190, %s191
      %p195 = pneg %p189
      %p196 = scmp.eq.s32.totalorder %s28, 1
      %p197 = por %p195, %p196
      %p198 = scmp.ne.s32.totalorder %s190, %s193
      %p199 = scmp.eq.s32.totalorder %s28, 0
      %p200 = por %p198, %p199
      %p201 = scmp.ne.s32.totalorder %s190, %s193
      %p202 = scmp.eq.s32.totalorder %s33, 1
      %p203 = por %p201, %p202
      %p204 = scmp.ne.s32.totalorder %s193, %s194
      %p205 = scmp.eq.s32.totalorder %s33, 0
      %p206 = por %p204, %p205
      %p207 = scmp.ne.s32.totalorder %s193, %s194
      %p208 = scmp.eq.s32.totalorder %s34, 1
      %p209 = por %p207, %p208
      %p211 = scmp.ne.s32.totalorder %s194, %s210
      %p212 = scmp.eq.s32.totalorder %s34, 0
      %p213 = por %p211, %p212
      %s214 = ssub.s32 %s28, %s35
      %p215 = scmp.eq.s32.totalorder %s214, 0
      %s217 = sadd.s32 %s216, 1
      %s218 = scalar_select %p215, %s216, %s217
      %p221 = pneg %p215
      %p222 = scmp.eq.s32.totalorder %s28, 1
      %p223 = por %p221, %p222
      %p224 = scmp.ne.s32.totalorder %s216, %s219
      %p225 = scmp.eq.s32.totalorder %s28, 0
      %p226 = por %p224, %p225
      %p227 = scmp.ne.s32.totalorder %s216, %s219
      %p228 = scmp.eq.s32.totalorder %s33, 1
      %p229 = por %p227, %p228
      %p230 = scmp.ne.s32.totalorder %s219, %s220
      %p231 = scmp.eq.s32.totalorder %s33, 0
      %p232 = por %p230, %p231
      %p233 = scmp.ne.s32.totalorder %s219, %s220
      %p234 = scmp.eq.s32.totalorder %s34, 1
      %p235 = por %p233, %p234
      %p237 = scmp.ne.s32.totalorder %s220, %s236
      %p238 = scmp.eq.s32.totalorder %s34, 0
      %p239 = por %p237, %p238
      %s240 = ssub.s32 %s28, %s35
      %p241 = scmp.eq.s32.totalorder %s240, 0
      %s243 = sadd.s32 %s242, 1
      %s244 = scalar_select %p241, %s242, %s243
      %p247 = pneg %p241
      %p248 = scmp.eq.s32.totalorder %s28, 1
      %p249 = por %p247, %p248
      %p250 = scmp.ne.s32.totalorder %s242, %s245
      %p251 = scmp.eq.s32.totalorder %s28, 0
      %p252 = por %p250, %p251
      %p253 = scmp.ne.s32.totalorder %s242, %s245
      %p254 = scmp.eq.s32.totalorder %s33, 1
      %p255 = por %p253, %p254
      %p256 = scmp.ne.s32.totalorder %s245, %s246
      %p257 = scmp.eq.s32.totalorder %s33, 0
      %p258 = por %p256, %p257
      %p259 = scmp.ne.s32.totalorder %s245, %s246
      %p260 = scmp.eq.s32.totalorder %s34, 1
      %p261 = por %p259, %p260
      %p263 = scmp.ne.s32.totalorder %s246, %s262
      %p264 = scmp.eq.s32.totalorder %s34, 0
      %p265 = por %p263, %p264
      %s266 = ssub.s32 %s28, %s35
      %p267 = scmp.eq.s32.totalorder %s266, 0
      %s269 = sadd.s32 %s268, 1
      %s270 = scalar_select %p267, %s268, %s269
      %p273 = pneg %p267
      %p274 = scmp.eq.s32.totalorder %s28, 1
      %p275 = por %p273, %p274
      %p276 = scmp.ne.s32.totalorder %s268, %s271
      %p277 = scmp.eq.s32.totalorder %s28, 0
      %p278 = por %p276, %p277
      %p279 = scmp.ne.s32.totalorder %s268, %s271
      %p280 = scmp.eq.s32.totalorder %s33, 1
      %p281 = por %p279, %p280
      %p282 = scmp.ne.s32.totalorder %s271, %s272
      %p283 = scmp.eq.s32.totalorder %s33, 0
      %p284 = por %p282, %p283
      %p285 = scmp.ne.s32.totalorder %s271, %s272
      %p286 = scmp.eq.s32.totalorder %s34, 1
      %p287 = por %p285, %p286
      %p289 = scmp.ne.s32.totalorder %s272, %s288
      %p290 = scmp.eq.s32.totalorder %s34, 0
      %p291 = por %p289, %p290
      %s292 = ssub.s32 %s28, %s35
      %p293 = scmp.eq.s32.totalorder %s292, 0
      %s295 = sadd.s32 %s294, 1
      %s296 = scalar_select %p293, %s294, %s295
      %p299 = pneg %p293
      %p300 = scmp.eq.s32.totalorder %s28, 1
      %p301 = por %p299, %p300
      %p302 = scmp.ne.s32.totalorder %s294, %s297
      %p303 = scmp.eq.s32.totalorder %s28, 0
      %p304 = por %p302, %p303
      %p305 = scmp.ne.s32.totalorder %s294, %s297
      %p306 = scmp.eq.s32.totalorder %s33, 1
      %p307 = por %p305, %p306
      %p308 = scmp.ne.s32.totalorder %s297, %s298
      %p309 = scmp.eq.s32.totalorder %s33, 0
      %p310 = por %p308, %p309
      %p311 = scmp.ne.s32.totalorder %s297, %s298
      %p312 = scmp.eq.s32.totalorder %s34, 1
      %p313 = por %p311, %p312
      %p315 = scmp.ne.s32.totalorder %s298, %s314
      %p316 = scmp.eq.s32.totalorder %s34, 0
      %p317 = por %p315, %p316
      %s318 = ssub.s32 %s28, %s35
      %p319 = scmp.eq.s32.totalorder %s318, 0
      %s321 = sadd.s32 %s320, 1
      %s322 = scalar_select %p319, %s320, %s321
      %p325 = pneg %p319
      %p326 = scmp.eq.s32.totalorder %s28, 1
      %p327 = por %p325, %p326
      %p328 = scmp.ne.s32.totalorder %s320, %s323
      %p329 = scmp.eq.s32.totalorder %s28, 0
      %p330 = por %p328, %p329
      %p331 = scmp.ne.s32.totalorder %s320, %s323
      %p332 = scmp.eq.s32.totalorder %s33, 1
      %p333 = por %p331, %p332
      %p334 = scmp.ne.s32.totalorder %s323, %s324
      %p335 = scmp.eq.s32.totalorder %s33, 0
      %p336 = por %p334, %p335
      %p337 = scmp.ne.s32.totalorder %s323, %s324
      %p338 = scmp.eq.s32.totalorder %s34, 1
      %p339 = por %p337, %p338
      %p341 = scmp.ne.s32.totalorder %s324, %s340
      %p342 = scmp.eq.s32.totalorder %s34, 0
      %p343 = por %p341, %p342
      %s344 = ssub.s32 %s28, %s35
      %p345 = scmp.eq.s32.totalorder %s344, 0
      %s347 = sadd.s32 %s346, 1
      %s348 = scalar_select %p345, %s346, %s347
      %p351 = pneg %p345
      %p352 = scmp.eq.s32.totalorder %s28, 1
      %p353 = por %p351, %p352
      %p354 = scmp.ne.s32.totalorder %s346, %s349
      %p355 = scmp.eq.s32.totalorder %s28, 0
      %p356 = por %p354, %p355
      %p357 = scmp.ne.s32.totalorder %s346, %s349
      %p358 = scmp.eq.s32.totalorder %s33, 1
      %p359 = por %p357, %p358
      %p360 = scmp.ne.s32.totalorder %s349, %s350
      %p361 = scmp.eq.s32.totalorder %s33, 0
      %p362 = por %p360, %p361
      %p363 = scmp.ne.s32.totalorder %s349, %s350
      %p364 = scmp.eq.s32.totalorder %s34, 1
      %p365 = por %p363, %p364
      %p367 = scmp.ne.s32.totalorder %s350, %s366
      %p368 = scmp.eq.s32.totalorder %s34, 0
      %p369 = por %p367, %p368
      %s371 = sadd.s32 %s370, 1
      %p374 = scmp.eq.s32.totalorder %s28, 1
      %p375 = scmp.ne.s32.totalorder %s370, %s372
      %p376 = scmp.eq.s32.totalorder %s28, 0
      %p377 = por %p375, %p376
      %p378 = scmp.ne.s32.totalorder %s370, %s372
      %p379 = scmp.eq.s32.totalorder %s33, 1
      %p380 = por %p378, %p379
      %p381 = scmp.ne.s32.totalorder %s372, %s373
      %p382 = scmp.eq.s32.totalorder %s33, 0
      %p383 = por %p381, %p382
      %p384 = scmp.ne.s32.totalorder %s372, %s373
      %p385 = scmp.eq.s32.totalorder %s34, 1
      %p386 = por %p384, %p385
      %p388 = scmp.ne.s32.totalorder %s373, %s387
      %p389 = scmp.eq.s32.totalorder %s34, 0
      %p390 = por %p388, %p389
      %p391 = scmp.le.s32.totalorder 1, %s28
      %p392 = scmp.lt.s32.totalorder %s28, 3
      %p393 = pnand %p391, %p392
      %p394 = pneg %p393
      // Predicated region
      $region9: #{tpu_custom_call.1} parent=5 // pred_check
        _
      $region10: #{tpu_custom_call.1} parent=5 // pred_check_branch
        %396 = sbr.rel (%p393) target = $region12
      $region11: #{tpu_custom_call.1} parent=5 // pred_region
        %s397 = ssub.s32 %s28, 1
        // Predicated region
        $region13: #{tpu_custom_call.1} parent=11 // pred_check
          %p398 = pneg %p49
        $region14: #{tpu_custom_call.1} parent=11 // pred_check_branch
          %400 = sbr.rel (%p398) target = $region16
        $region15: #{tpu_custom_call.1} parent=11 // pred_region
          _
        $region16: #{tpu_custom_call.1} parent=11 // pred_fallthru
          _
        // Predicated region
        $region17: #{tpu_custom_call.1} parent=11 // pred_check
          %p401 = pneg %p70
        $region18: #{tpu_custom_call.1} parent=11 // pred_check_branch
          %403 = sbr.rel (%p401) target = $region20
        $region19: #{tpu_custom_call.1} parent=11 // pred_region
          %s405 = ssub.s32 128, 128
          %406 = vsyncadd [#allocation5], %s405
          %s407 = sshll.u32 [#allocation4], 4
          %s408 = int_to_ptr.vmem [resolvable:$true] %s407
          %413 = dma.hbm_to_vmem [thread:$0]  %s1, 128, %s408, [#allocation5], 64, 64, 4
        $region20: #{tpu_custom_call.1} parent=11 // pred_fallthru
          _
        // Predicated region
        $region21: #{tpu_custom_call.1} parent=11 // pred_check
          %p414 = pneg %p91
        $region22: #{tpu_custom_call.1} parent=11 // pred_check_branch
          %416 = sbr.rel (%p414) target = $region24
        $region23: #{tpu_custom_call.1} parent=11 // pred_region
          %s418 = ssub.s32 64, 64
          %419 = vsyncadd [#allocation7], %s418
          %s421 = sshll.u32 [#allocation6], 4
          %s422 = int_to_ptr.vmem [resolvable:$true] %s421
          %424 = dma.hbm_to_vmem [thread:$0]  %s2, 64, %s422, [#allocation7]
        $region24: #{tpu_custom_call.1} parent=11 // pred_fallthru
          _
        // Predicated region
        $region25: #{tpu_custom_call.1} parent=11 // pred_check
          %p425 = pneg %p112
        $region26: #{tpu_custom_call.1} parent=11 // pred_check_branch
          %427 = sbr.rel (%p425) target = $region28
        $region27: #{tpu_custom_call.1} parent=11 // pred_region
          _
        $region28: #{tpu_custom_call.1} parent=11 // pred_fallthru
          _
        // Predicated region
        $region29: #{tpu_custom_call.1} parent=11 // pred_check
          %p428 = pneg %p133
        $region30: #{tpu_custom_call.1} parent=11 // pred_check_branch
          %430 = sbr.rel (%p428) target = $region32
        $region31: #{tpu_custom_call.1} parent=11 // pred_region
          _
        $region32: #{tpu_custom_call.1} parent=11 // pred_fallthru
          _
        // Predicated region
        $region33: #{tpu_custom_call.1} parent=11 // pred_check
          %p431 = pneg %p154
        $region34: #{tpu_custom_call.1} parent=11 // pred_check_branch
          %433 = sbr.rel (%p431) target = $region36
        $region35: #{tpu_custom_call.1} parent=11 // pred_region
          %s435 = ssub.s32 16, 16
          %436 = vsyncadd [#allocation7], %s435
          %s438 = sshll.u32 [#allocation8], 4
          %s439 = int_to_ptr.vmem [resolvable:$true] %s438
          %441 = dma.hbm_to_vmem [thread:$0]  %s5, 16, %s439, [#allocation7]
        $region36: #{tpu_custom_call.1} parent=11 // pred_fallthru
          _
      $region12: #{tpu_custom_call.1} parent=5 // pred_fallthru
        _
      %p442 = scmp.lt.s32.totalorder %s28, 2
      // Predicated region
      $region37: #{tpu_custom_call.1} parent=5 // pred_check
        %p443 = pneg %p442
      $region38: #{tpu_custom_call.1} parent=5 // pred_check_branch
        %445 = sbr.rel (%p443) target = $region40
      $region39: #{tpu_custom_call.1} parent=5 // pred_region
        // Predicated region
        $region41: #{tpu_custom_call.1} parent=39 // pred_check
          %p446 = pneg %p174
        $region42: #{tpu_custom_call.1} parent=39 // pred_check_branch
          %448 = sbr.rel (%p446) target = $region44
        $region43: #{tpu_custom_call.1} parent=39 // pred_region
          %p449 = scmp.lt.s32.totalorder %s28, 1
          %s450 = scalar_select %p449, %s28, 1
          %s451 = smul.addr %s450, 8
          %s452 = smul.addr %s451, 4
          %s453 = scalar_lea.vmem %s6, %s452
        $region44: #{tpu_custom_call.1} parent=39 // pred_fallthru
          _
        // Predicated region
        $region45: #{tpu_custom_call.1} parent=39 // pred_check
          %p454 = pneg %p200
        $region46: #{tpu_custom_call.1} parent=39 // pred_check_branch
          %456 = sbr.rel (%p454) target = $region48
        $region47: #{tpu_custom_call.1} parent=39 // pred_region
          %s457 = sand.u32 %s28, 1
          %s458 = scalar_lea.sflag [#allocation10], %s457
          %s459 = sand.u32 %s190, 1
          %s460 = smul.addr %s459, 2
          %s461 = scalar_lea.vmem [#allocation9], %s460
          %s463 = ssub.s32 32, 32
          %464 = vsyncadd %s458, %s463
          %s465 = smul.addr %s28, 2
          %s466 = smul.addr %s465, 16
          %s467 = scalar_lea.hbm %s7, %s466
          %s469 = sshll.u32 %s461, 4
          %s470 = int_to_ptr.vmem [resolvable:$true] %s469
          %472 = dma.hbm_to_vmem [thread:$0]  %s467, 32, %s470, %s458
        $region48: #{tpu_custom_call.1} parent=39 // pred_fallthru
          _
        // Predicated region
        $region49: #{tpu_custom_call.1} parent=39 // pred_check
          %p473 = pneg %p226
        $region50: #{tpu_custom_call.1} parent=39 // pred_check_branch
          %475 = sbr.rel (%p473) target = $region52
        $region51: #{tpu_custom_call.1} parent=39 // pred_region
          %s476 = sand.u32 %s28, 1
          %s477 = scalar_lea.sflag [#allocation10], %s476
          %s478 = sand.u32 %s216, 1
          %s479 = smul.addr %s478, 2
          %s480 = scalar_lea.vmem [#allocation11], %s479
          %s482 = ssub.s32 32, 32
          %483 = vsyncadd %s477, %s482
          %s484 = smul.addr %s28, 32
          %s485 = scalar_lea.hbm %s8, %s484
          %s487 = sshll.u32 %s480, 4
          %s488 = int_to_ptr.vmem [resolvable:$true] %s487
          %490 = dma.hbm_to_vmem [thread:$0]  %s485, 32, %s488, %s477
        $region52: #{tpu_custom_call.1} parent=39 // pred_fallthru
          _
        // Predicated region
        $region53: #{tpu_custom_call.1} parent=39 // pred_check
          %p491 = pneg %p252
        $region54: #{tpu_custom_call.1} parent=39 // pred_check_branch
          %493 = sbr.rel (%p491) target = $region56
        $region55: #{tpu_custom_call.1} parent=39 // pred_region
          %p494 = scmp.lt.s32.totalorder %s28, 1
          %s495 = scalar_select %p494, %s28, 1
          %s496 = smul.addr %s495, 4
          %s497 = smul.addr %s496, 4
          %s498 = scalar_lea.vmem %s9, %s497
        $region56: #{tpu_custom_call.1} parent=39 // pred_fallthru
          _
        // Predicated region
        $region57: #{tpu_custom_call.1} parent=39 // pred_check
          %p499 = pneg %p278
        $region58: #{tpu_custom_call.1} parent=39 // pred_check_branch
          %501 = sbr.rel (%p499) target = $region60
        $region59: #{tpu_custom_call.1} parent=39 // pred_region
          %s502 = sand.u32 %s28, 1
          %s503 = scalar_lea.sflag [#allocation13], %s502
          %s504 = sand.u32 %s268, 1
          %s505 = scalar_lea.vmem [#allocation12], %s504
          %s507 = ssub.s32 16, 16
          %508 = vsyncadd %s503, %s507
          %s509 = smul.addr %s28, 16
          %s510 = scalar_lea.hbm %s10, %s509
          %s512 = sshll.u32 %s505, 4
          %s513 = int_to_ptr.vmem [resolvable:$true] %s512
          %515 = dma.hbm_to_vmem [thread:$0]  %s510, 16, %s513, %s503
        $region60: #{tpu_custom_call.1} parent=39 // pred_fallthru
          _
        // Predicated region
        $region61: #{tpu_custom_call.1} parent=39 // pred_check
          %p516 = pneg %p304
        $region62: #{tpu_custom_call.1} parent=39 // pred_check_branch
          %518 = sbr.rel (%p516) target = $region64
        $region63: #{tpu_custom_call.1} parent=39 // pred_region
          %s519 = sand.u32 %s28, 1
          %s520 = scalar_lea.sflag [#allocation13], %s519
          %s521 = sand.u32 %s294, 1
          %s522 = smul.addr %s521, 16
          %s523 = scalar_lea.vmem [#allocation14], %s522
          %s525 = ssub.s32 256, 256
          %526 = vsyncadd %s520, %s525
          %s527 = smul.addr %s28, 4
          %s528 = smul.addr %s527, 64
          %s529 = scalar_lea.hbm %s11, %s528
          %s530 = sshll.u32 %s523, 4
          %s531 = int_to_ptr.vmem [resolvable:$true] %s530
          %536 = dma.hbm_to_vmem [thread:$0]  %s529, 256, %s531, %s520, 64, 64, 4
        $region64: #{tpu_custom_call.1} parent=39 // pred_fallthru
          _
        // Predicated region
        $region65: #{tpu_custom_call.1} parent=39 // pred_check
          %p537 = pneg %p330
        $region66: #{tpu_custom_call.1} parent=39 // pred_check_branch
          %539 = sbr.rel (%p537) target = $region68
        $region67: #{tpu_custom_call.1} parent=39 // pred_region
          %p540 = scmp.lt.s32.totalorder %s28, 1
          %s541 = scalar_select %p540, %s28, 1
          %s542 = scalar_lea.vmem %s12, %s541
        $region68: #{tpu_custom_call.1} parent=39 // pred_fallthru
          _
        // Predicated region
        $region69: #{tpu_custom_call.1} parent=39 // pred_check
          %p543 = pneg %p356
        $region70: #{tpu_custom_call.1} parent=39 // pred_check_branch
          %545 = sbr.rel (%p543) target = $region72
        $region71: #{tpu_custom_call.1} parent=39 // pred_region
          %p546 = scmp.lt.s32.totalorder %s28, 1
          %s547 = scalar_select %p546, %s28, 1
          %s548 = smul.addr %s547, 8
          %s549 = scalar_lea.vmem %s13, %s548
        $region72: #{tpu_custom_call.1} parent=39 // pred_fallthru
          _
      $region40: #{tpu_custom_call.1} parent=5 // pred_fallthru
        _
      %p550 = scmp.le.s32.totalorder 1, %s28
      %p551 = scmp.lt.s32.totalorder %s28, 3
      %p552 = pnand %p550, %p551
      %p553 = pneg %p552
      // Predicated region
      $region73: #{tpu_custom_call.1} parent=5 // pred_check
        _
      $region74: #{tpu_custom_call.1} parent=5 // pred_check_branch
        %555 = sbr.rel (%p552) target = $region76
      $region75: #{tpu_custom_call.1} parent=5 // pred_region
        %s556 = ssub.s32 %s28, 1
        // Predicated region
        $region77: #{tpu_custom_call.1} parent=75 // pred_check
          %p557 = pneg %p70
        $region78: #{tpu_custom_call.1} parent=75 // pred_check_branch
          %559 = sbr.rel (%p557) target = $region80
        $region79: #{tpu_custom_call.1} parent=75 // pred_region
          %560 = dma.done [#allocation5], 128
        $region80: #{tpu_custom_call.1} parent=75 // pred_fallthru
          _
        // Predicated region
        $region81: #{tpu_custom_call.1} parent=75 // pred_check
          %p561 = pneg %p91
        $region82: #{tpu_custom_call.1} parent=75 // pred_check_branch
          %563 = sbr.rel (%p561) target = $region84
        $region83: #{tpu_custom_call.1} parent=75 // pred_region
          %564 = dma.done [#allocation7], 64
        $region84: #{tpu_custom_call.1} parent=75 // pred_fallthru
          _
        // Predicated region
        $region85: #{tpu_custom_call.1} parent=75 // pred_check
          %p565 = pneg %p154
        $region86: #{tpu_custom_call.1} parent=75 // pred_check_branch
          %567 = sbr.rel (%p565) target = $region88
        $region87: #{tpu_custom_call.1} parent=75 // pred_region
          %568 = dma.done [#allocation7], 16
        $region88: #{tpu_custom_call.1} parent=75 // pred_fallthru
          _
        %s569 = sand.u32 %s33, 1
        %s570 = scalar_lea.sflag [#allocation10], %s569
        %s571 = sand.u32 %s193, 1
        %s572 = smul.addr %s571, 2
        %s573 = scalar_lea.vmem [#allocation9], %s572
        // Predicated region
        $region89: #{tpu_custom_call.1} parent=75 // pred_check
          %p574 = pneg %p206
        $region90: #{tpu_custom_call.1} parent=75 // pred_check_branch
          %576 = sbr.rel (%p574) target = $region92
        $region91: #{tpu_custom_call.1} parent=75 // pred_region
          %577 = dma.done %s570, 32
        $region92: #{tpu_custom_call.1} parent=75 // pred_fallthru
          _
        %s578 = sand.u32 %s33, 1
        %s579 = scalar_lea.sflag [#allocation10], %s578
        %s580 = sand.u32 %s219, 1
        %s581 = smul.addr %s580, 2
        %s582 = scalar_lea.vmem [#allocation11], %s581
        // Predicated region
        $region93: #{tpu_custom_call.1} parent=75 // pred_check
          %p583 = pneg %p232
        $region94: #{tpu_custom_call.1} parent=75 // pred_check_branch
          %585 = sbr.rel (%p583) target = $region96
        $region95: #{tpu_custom_call.1} parent=75 // pred_region
          %586 = dma.done %s579, 32
        $region96: #{tpu_custom_call.1} parent=75 // pred_fallthru
          _
        %s587 = sand.u32 %s33, 1
        %s588 = scalar_lea.sflag [#allocation13], %s587
        %s589 = sand.u32 %s271, 1
        %s590 = scalar_lea.vmem [#allocation12], %s589
        // Predicated region
        $region97: #{tpu_custom_call.1} parent=75 // pred_check
          %p591 = pneg %p284
        $region98: #{tpu_custom_call.1} parent=75 // pred_check_branch
          %593 = sbr.rel (%p591) target = $region100
        $region99: #{tpu_custom_call.1} parent=75 // pred_region
          %594 = dma.done %s588, 16
        $region100: #{tpu_custom_call.1} parent=75 // pred_fallthru
          _
        %s595 = sand.u32 %s33, 1
        %s596 = scalar_lea.sflag [#allocation13], %s595
        %s597 = sand.u32 %s297, 1
        %s598 = smul.addr %s597, 16
        %s599 = scalar_lea.vmem [#allocation14], %s598
        // Predicated region
        $region101: #{tpu_custom_call.1} parent=75 // pred_check
          %p600 = pneg %p310
        $region102: #{tpu_custom_call.1} parent=75 // pred_check_branch
          %602 = sbr.rel (%p600) target = $region104
        $region103: #{tpu_custom_call.1} parent=75 // pred_region
          %603 = dma.done %s596, 256
        $region104: #{tpu_custom_call.1} parent=75 // pred_fallthru
          _
        %p604 = pneg %p49
        %p605 = pneg %p46
        %p606 = pneg %p70
        %p607 = pneg %p67
        %p608 = pneg %p91
        %p609 = pneg %p88
        %p610 = pneg %p112
        %p611 = pneg %p109
        %p612 = pneg %p133
        %p613 = pneg %p130
        %p614 = pneg %p154
        %p615 = pneg %p151
        %p616 = scmp.lt.s32.totalorder %s33, 1
        %s617 = scalar_select %p616, %s33, 1
        %s618 = smul.addr %s617, 8
        %s619 = smul.addr %s618, 4
        %s620 = scalar_lea.vmem %s6, %s619
        %p621 = pneg %p180
        %p622 = pneg %p177
        %s623 = sand.u32 %s33, 1
        %s624 = scalar_lea.sflag [#allocation10], %s623
        %s625 = sand.u32 %s193, 1
        %s626 = smul.addr %s625, 2
        %s627 = scalar_lea.vmem [#allocation9], %s626
        %p628 = pneg %p206
        %p629 = pneg %p203
        %s630 = sand.u32 %s33, 1
        %s631 = scalar_lea.sflag [#allocation10], %s630
        %s632 = sand.u32 %s219, 1
        %s633 = smul.addr %s632, 2
        %s634 = scalar_lea.vmem [#allocation11], %s633
        %p635 = pneg %p232
        %p636 = pneg %p229
        %p637 = scmp.lt.s32.totalorder %s33, 1
        %s638 = scalar_select %p637, %s33, 1
        %s639 = smul.addr %s638, 4
        %s640 = smul.addr %s639, 4
        %s641 = scalar_lea.vmem %s9, %s640
        %p642 = pneg %p258
        %p643 = pneg %p255
        %s644 = sand.u32 %s33, 1
        %s645 = scalar_lea.sflag [#allocation13], %s644
        %s646 = sand.u32 %s271, 1
        %s647 = scalar_lea.vmem [#allocation12], %s646
        %p648 = pneg %p284
        %p649 = pneg %p281
        %s650 = sand.u32 %s33, 1
        %s651 = scalar_lea.sflag [#allocation13], %s650
        %s652 = sand.u32 %s297, 1
        %s653 = smul.addr %s652, 16
        %s654 = scalar_lea.vmem [#allocation14], %s653
        %p655 = pneg %p310
        %p656 = pneg %p307
        %p657 = scmp.lt.s32.totalorder %s33, 1
        %s658 = scalar_select %p657, %s33, 1
        %s659 = scalar_lea.vmem %s12, %s658
        %p660 = pneg %p336
        %p661 = pneg %p333
        %p662 = scmp.lt.s32.totalorder %s33, 1
        %s663 = scalar_select %p662, %s33, 1
        %s664 = smul.addr %s663, 8
        %s665 = scalar_lea.vmem %s13, %s664
        %p666 = pneg %p362
        %p667 = pneg %p359
        %p668 = pneg %p383
        %p669 = pneg %p380
        %p670 = scmp.lt.s32.totalorder %s33, 1
        %s671 = scalar_select %p670, %s33, 1
        %s672 = smul.addr %s671, 8
        %s673 = smul.addr %s672, 4
        %s674 = scalar_lea.vmem %s6, %s673
        %p675 = scmp.lt.s32.totalorder %s33, 1
        %s676 = scalar_select %p675, %s33, 1
        %s677 = smul.addr %s676, 4
        %s678 = smul.addr %s677, 4
        %s679 = scalar_lea.vmem %s9, %s678
        %p680 = scmp.lt.s32.totalorder %s33, 1
        %s681 = scalar_select %p680, %s33, 1
        %s682 = scalar_lea.vmem %s12, %s681
        %p683 = scmp.lt.s32.totalorder %s33, 1
        %s684 = scalar_select %p683, %s33, 1
        %s685 = smul.addr %s684, 8
        %s686 = scalar_lea.vmem %s13, %s685
        %p688 = scmp.eq.s32.totalorder %s33, 0
        // Predicated region
        $region105: #{tpu_custom_call.1} parent=75 // pred_check
          %p689 = pneg %p688
        $region106: #{tpu_custom_call.1} parent=75 // pred_check_branch
          %691 = sbr.rel (%p689) target = $region108
        $region107: #{tpu_custom_call.1} parent=75 // pred_region
          %v692 = vld [vmem:[%s0] sm:$0xff]
          %v693 = vld [vmem:[%s0 + $0x8] sm:$0xff]
          %v694 = vpack.c.bf16 %v693, %v692
          %v695 = vld [vmem:[#allocation6] sm:$0xf]
          %v696 = vld [vmem:[%s3] sm:$0x1]
          %v698 = vlaneseq
          %v699 = vshrl.u32 %v698, 7
          %v700 = vsub.s32 0, %v699
          %v701 = vrot.slane %v696, %v700
          %vm703 = vcmask 64512
          %v705 = vsel %vm703, %v694, 0
          %vm707 = vcmask 1043456
          %v709 = vsel %vm707, %v695, 0
          %711 = vmatprep.subr.bf16.mxu0 0
          %712 = vmatpush1.bf16.msra.mxu0 %v709
          %713 = vmatprep.subr.bf16.mxu0 0
          %714 = vmatpush1.bf16.msra.mxu0 0
          %715 = vmatprep.subr.bf16.mxu0 0
          %716 = vmatpush1.bf16.msra.mxu0 0
          %717 = vmatprep.subr.bf16.mxu0 0
          %718 = vmatpush1.bf16.msra.mxu0 0
          %719 = vmatprep.subr.bf16.mxu0 0
          %720 = vmatpush1.bf16.msra.mxu0 0
          %721 = vmatprep.subr.bf16.mxu0 0
          %722 = vmatpush1.bf16.msra.mxu0 0
          %723 = vmatprep.subr.bf16.mxu0 0
          %724 = vmatpush1.bf16.msra.mxu0 0
          %725 = vmatprep.subr.bf16.mxu0 0
          %726 = vmatpush1.bf16.msra.mxu0 0
          %727 = vmatprep.subr.bf16.mxu0 0
          %728 = vmatpush1.bf16.msra.mxu0 0
          %729 = vmatprep.subr.bf16.mxu0 0
          %730 = vmatpush1.bf16.msra.mxu0 0
          %731 = vmatprep.subr.bf16.mxu0 0
          %732 = vmatpush1.bf16.msra.mxu0 0
          %733 = vmatprep.subr.bf16.mxu0 0
          %734 = vmatpush1.bf16.msra.mxu0 0
          %735 = vmatprep.subr.bf16.mxu0 0
          %736 = vmatpush1.bf16.msra.mxu0 0
          %737 = vmatprep.subr.bf16.mxu0 0
          %738 = vmatpush1.bf16.msra.mxu0 0
          %739 = vmatprep.subr.bf16.mxu0 0
          %740 = vmatpush1.bf16.msra.mxu0 0
          %741 = vmatprep.subr.bf16.mxu0 0
          %742 = vmatpush1.bf16.msra.mxu0 0
          %743 = vmatprep.mubr.bf16.mxu0 0
          %744 = vmatmul.mubr.bf16.gmra.mrb[0].mxu0 %v705
          %v745 = vpop.f32.mrb[0].mxu0
          %v746 = vadd.f32 %v701, %v745
          %v747 = vpop.f32.mrb[0].mxu0
          %v748 = vpop.f32.mrb[0].mxu0
          %v749 = vadd.f32 %v701, %v748
          %v750 = vpop.f32.mrb[0].mxu0
          %751 = vdwg.mxu0
          %vm752 = vcmask 261120
          %753 = vst.msk [vmem:[#allocation2] sm:$0xff] %vm752, %v746
          %754 = vst.msk [vmem:[#allocation2 + $0x8] sm:$0xff] %vm752, %v749
        $region108: #{tpu_custom_call.1} parent=75 // pred_fallthru
          _
        %v755 = vld [vmem:[#allocation2] sm:$0xff]
        %v756 = vld [vmem:[#allocation2 + $0x8] sm:$0xff]
        %v757 = vld [vmem:[#allocation4] sm:$0xf]
        %v758 = vld [vmem:[#allocation4 + $0x4] sm:$0xf]
        %v759 = vunpack.c.l.bf16 %v757
        %v760 = vunpack.c.l.bf16 %v758
        %vm761 = vcmp.gt.f32.partialorder %v759, 0.0
        %vm762 = vcmp.gt.f32.partialorder %v760, 0.0
        %v763 = vsel %vm761, 0.0, -1e+30
        %v764 = vsel %vm762, 0.0, -1e+30
        %v765 = vpack.c.bf16 %v756, %v755
        %v766 = vld [vmem:[%s674] sm:$0xff]
        %v767 = vld [vmem:[%s674 + $0x8] sm:$0xff]
        %v768 = vld [vmem:[%s674 + $0x10] sm:$0xff]
        %v769 = vld [vmem:[%s674 + $0x18] sm:$0xff]
        %v770 = vld [vmem:[%s573] sm:$0x3]
        %v772 = vlaneseq
        %v773 = vshrl.u32 %v772, 7
        %v774 = vsub.s32 0, %v773
        %v775 = vrot.slane %v770, %v774
        %v776 = vlaneseq
        %v777 = vshrl.u32 %v776, 7
        %v778 = vsub.s32 1, %v777
        %v779 = vrot.slane %v770, %v778
        %v786 = vunpack.c.l.b16 %v766
        %v787 = vunpack.c.h.b16 %v766
        %v788 = vunpack.c.l.b16 %v767
        %v789 = vunpack.c.h.b16 %v767
        %v790 = vunpack.c.l.b16 %v768
        %v791 = vunpack.c.h.b16 %v768
        %v792 = vunpack.c.l.b16 %v769
        %v793 = vunpack.c.h.b16 %v769
        %v794 = vpack.c.b16 %v788, %v786
        %v795 = vpack.c.b16 %v789, %v787
        %v796 = vpack.c.b16 %v792, %v790
        %v797 = vpack.c.b16 %v793, %v791
        %vm802 = vcmask 261120
        %v804 = vsel %vm802, %v765, 0
        %806 = vmatprep.subr.bf16.mxu0 %v795
        %807 = vmatpush1.bf16.msra.mxu0 %v794
        %808 = vmatprep.subr.bf16.mxu0 %v797
        %809 = vmatpush1.bf16.msra.mxu0 %v796
        %810 = vmatprep.subr.bf16.mxu0 0
        %811 = vmatpush1.bf16.msra.mxu0 0
        %812 = vmatprep.subr.bf16.mxu0 0
        %813 = vmatpush1.bf16.msra.mxu0 0
        %814 = vmatprep.subr.bf16.mxu0 0
        %815 = vmatpush1.bf16.msra.mxu0 0
        %816 = vmatprep.subr.bf16.mxu0 0
        %817 = vmatpush1.bf16.msra.mxu0 0
        %818 = vmatprep.subr.bf16.mxu0 0
        %819 = vmatpush1.bf16.msra.mxu0 0
        %820 = vmatprep.subr.bf16.mxu0 0
        %821 = vmatpush1.bf16.msra.mxu0 0
        %822 = vmatprep.subr.bf16.mxu0 0
        %823 = vmatpush1.bf16.msra.mxu0 0
        %824 = vmatprep.subr.bf16.mxu0 0
        %825 = vmatpush1.bf16.msra.mxu0 0
        %826 = vmatprep.subr.bf16.mxu0 0
        %827 = vmatpush1.bf16.msra.mxu0 0
        %828 = vmatprep.subr.bf16.mxu0 0
        %829 = vmatpush1.bf16.msra.mxu0 0
        %830 = vmatprep.subr.bf16.mxu0 0
        %831 = vmatpush1.bf16.msra.mxu0 0
        %832 = vmatprep.subr.bf16.mxu0 0
        %833 = vmatpush1.bf16.msra.mxu0 0
        %834 = vmatprep.subr.bf16.mxu0 0
        %835 = vmatpush1.bf16.msra.mxu0 0
        %836 = vmatprep.subr.bf16.mxu0 0
        %837 = vmatpush1.bf16.msra.mxu0 0
        %838 = vmatprep.mubr.bf16.mxu0 0
        %839 = vmatmul.mubr.bf16.gmra.mrb[0].mxu0 %v804
        %v840 = vpop.f32.mrb[0].mxu0
        %v841 = vadd.f32 %v775, %v840
        %v842 = vpop.f32.mrb[0].mxu0
        %v843 = vadd.f32 %v779, %v842
        %v844 = vpop.f32.mrb[0].mxu0
        %v845 = vadd.f32 %v775, %v844
        %v846 = vpop.f32.mrb[0].mxu0
        %v847 = vadd.f32 %v779, %v846
        %848 = vdwg.mxu0
        %v849 = vpack.c.bf16 %v845, %v841
        %851 = vrot.lane.b32.xlu0 %v849, 96
        %v852 = vpop.permute.xlu0 %851
        %vm853 = vcmask 64512
        %v855 = vsel %vm853, %v849, 0
        %v858 = vsel %vm853, %v852, 0
        %860 = vmatprep.subr.bf16.mxu0 0
        %861 = vmatpush1.bf16.xpose.msra.mxu0 %v858
        %862 = vmatprep.subr.bf16.mxu0 0
        %863 = vmatpush1.bf16.xpose.msra.mxu0 0
        %864 = vmatprep.subr.bf16.mxu0 0
        %865 = vmatpush1.bf16.xpose.msra.mxu0 0
        %866 = vmatprep.subr.bf16.mxu0 0
        %867 = vmatpush1.bf16.xpose.msra.mxu0 0
        %868 = vmatprep.subr.bf16.mxu0 0
        %869 = vmatpush1.bf16.xpose.msra.mxu0 0
        %870 = vmatprep.subr.bf16.mxu0 0
        %871 = vmatpush1.bf16.xpose.msra.mxu0 0
        %872 = vmatprep.subr.bf16.mxu0 0
        %873 = vmatpush1.bf16.xpose.msra.mxu0 0
        %874 = vmatprep.subr.bf16.mxu0 0
        %875 = vmatpush1.bf16.xpose.msra.mxu0 0
        %876 = vmatprep.subr.bf16.mxu0 0
        %877 = vmatpush1.bf16.xpose.msra.mxu0 0
        %878 = vmatprep.subr.bf16.mxu0 0
        %879 = vmatpush1.bf16.xpose.msra.mxu0 0
        %880 = vmatprep.subr.bf16.mxu0 0
        %881 = vmatpush1.bf16.xpose.msra.mxu0 0
        %882 = vmatprep.subr.bf16.mxu0 0
        %883 = vmatpush1.bf16.xpose.msra.mxu0 0
        %884 = vmatprep.subr.bf16.mxu0 0
        %885 = vmatpush1.bf16.xpose.msra.mxu0 0
        %886 = vmatprep.subr.bf16.mxu0 0
        %887 = vmatpush1.bf16.xpose.msra.mxu0 0
        %888 = vmatprep.subr.bf16.mxu0 0
        %889 = vmatpush1.bf16.xpose.msra.mxu0 0
        %890 = vmatprep.subr.bf16.mxu0 0
        %891 = vmatpush1.bf16.xpose.msra.mxu0 0
        %892 = vmatprep.mubr.bf16.mxu0 0
        %893 = vmatmul.mubr.bf16.gmra.mrb[0].mxu0 %v855
        %v894 = vpop.f32.mrb[0].mxu0
        %v895 = vadd.f32 %v763, %v894
        %v896 = vpop.f32.mrb[0].mxu0
        %v897 = vpop.f32.mrb[0].mxu0
        %v898 = vadd.f32 %v764, %v897
        %v899 = vpop.f32.mrb[0].mxu0
        %900 = vdwg.mxu0
        %vm901 = vcmask 130048
        %v902 = vsel %vm901, %v895, -inf
        %903 = vmax.xlane.f32.xlu0 %v902
        %v904 = vpop.xlane.xlu0 %903
        %v905 = vsel %vm901, %v898, -inf
        %906 = vmax.xlane.f32.xlu0 %v905
        %v907 = vpop.xlane.xlu0 %906
        %v908 = vsub.f32 %v895, %v904
        %v909 = vsub.f32 %v898, %v907
        %v910 = vmul.f32 %v908, 1.442695
        %v911 = vpow.pop %v910
        %v912 = vmul.f32 %v909, 1.442695
        %v913 = vpow.pop %v912
        %v914 = vmul.f32 %v759, %v911
        %v915 = vmul.f32 %v760, %v913
        %v916 = vsel %vm901, %v914, 0.0
        %917 = vadd.xlane.f32.xlu0 %v916
        %v918 = vpop.xlane.xlu0 %917
        %v919 = vsel %vm901, %v915, 0.0
        %920 = vadd.xlane.f32.xlu0 %v919
        %v921 = vpop.xlane.xlu0 %920
        %v922 = vpack.c.bf16 %v915, %v914
        %923 = vrot.lane.b32.xlu0 %v849, 64
        %v924 = vpop.permute.xlu0 %923
        %v927 = vsel %vm901, %v922, 0
        %929 = vmatprep.subr.bf16.mxu0 0
        %930 = vmatpush1.bf16.msra.mxu0 %v924
        %931 = vmatprep.subr.bf16.mxu0 0
        %932 = vmatpush1.bf16.msra.mxu0 0
        %933 = vmatprep.subr.bf16.mxu0 0
        %934 = vmatpush1.bf16.msra.mxu0 0
        %935 = vmatprep.subr.bf16.mxu0 0
        %936 = vmatpush1.bf16.msra.mxu0 0
        %937 = vmatprep.subr.bf16.mxu0 0
        %938 = vmatpush1.bf16.msra.mxu0 0
        %939 = vmatprep.subr.bf16.mxu0 0
        %940 = vmatpush1.bf16.msra.mxu0 0
        %941 = vmatprep.subr.bf16.mxu0 0
        %942 = vmatpush1.bf16.msra.mxu0 0
        %943 = vmatprep.subr.bf16.mxu0 0
        %944 = vmatpush1.bf16.msra.mxu0 0
        %945 = vmatprep.subr.bf16.mxu0 0
        %946 = vmatpush1.bf16.msra.mxu0 0
        %947 = vmatprep.subr.bf16.mxu0 0
        %948 = vmatpush1.bf16.msra.mxu0 0
        %949 = vmatprep.subr.bf16.mxu0 0
        %950 = vmatpush1.bf16.msra.mxu0 0
        %951 = vmatprep.subr.bf16.mxu0 0
        %952 = vmatpush1.bf16.msra.mxu0 0
        %953 = vmatprep.subr.bf16.mxu0 0
        %954 = vmatpush1.bf16.msra.mxu0 0
        %955 = vmatprep.subr.bf16.mxu0 0
        %956 = vmatpush1.bf16.msra.mxu0 0
        %957 = vmatprep.subr.bf16.mxu0 0
        %958 = vmatpush1.bf16.msra.mxu0 0
        %959 = vmatprep.subr.bf16.mxu0 0
        %960 = vmatpush1.bf16.msra.mxu0 0
        %961 = vmatprep.mubr.bf16.mxu0 0
        %962 = vmatmul.mubr.bf16.gmra.mrb[0].mxu0 %v927
        %v963 = vpop.f32.mrb[0].mxu0
        %v964 = vadd.f32 0.0, %v963
        %v965 = vpop.f32.mrb[0].mxu0
        %v966 = vpop.f32.mrb[0].mxu0
        %v967 = vadd.f32 0.0, %v966
        %v968 = vpop.f32.mrb[0].mxu0
        %969 = vdwg.mxu0
        %v970 = vmax.f32 %v918, 1e-30
        %v971 = vmax.f32 %v921, 1e-30
        %v972 = vrcp.pop %v970
        %v973 = vrcp.pop %v971
        %vm974 = vcmp.gt.f32.partialorder %v918, 0.0
        %vm975 = vcmp.gt.f32.partialorder %v921, 0.0
        %v976 = vmul.f32 %v964, %v972
        %v977 = vmul.f32 %v967, %v973
        %v978 = vsel %vm974, 1, 0
        %v979 = vsel %vm975, 1, 0
        %vm980 = vcmp.eq.s32.totalorder %v978, 1
        %vm981 = vcmp.eq.s32.totalorder %v979, 1
        %v982 = vsel %vm980, %v976, 0.0
        %v983 = vsel %vm981, %v977, 0.0
        %984 = vst.msk [vmem:[#allocation3] sm:$0xff] %vm853, %v982
        %985 = vst.msk [vmem:[#allocation3 + $0x8] sm:$0xff] %vm853, %v983
        %986 = vrot.lane.b32.xlu0 %v849, 120
        %v987 = vpop.permute.xlu0 %986
        %988 = vrot.lane.b32.xlu0 %v849, 88
        %v989 = vpop.permute.xlu0 %988
        %v991 = vsel %vm853, %v987, 0
        %v994 = vsel %vm853, %v989, 0
        %996 = vmatprep.subr.bf16.mxu0 0
        %997 = vmatpush1.bf16.xpose.msra.mxu0 %v994
        %998 = vmatprep.subr.bf16.mxu0 0
        %999 = vmatpush1.bf16.xpose.msra.mxu0 0
        %1000 = vmatprep.subr.bf16.mxu0 0
        %1001 = vmatpush1.bf16.xpose.msra.mxu0 0
        %1002 = vmatprep.subr.bf16.mxu0 0
        %1003 = vmatpush1.bf16.xpose.msra.mxu0 0
        %1004 = vmatprep.subr.bf16.mxu0 0
        %1005 = vmatpush1.bf16.xpose.msra.mxu0 0
        %1006 = vmatprep.subr.bf16.mxu0 0
        %1007 = vmatpush1.bf16.xpose.msra.mxu0 0
        %1008 = vmatprep.subr.bf16.mxu0 0
        %1009 = vmatpush1.bf16.xpose.msra.mxu0 0
        %1010 = vmatprep.subr.bf16.mxu0 0
        %1011 = vmatpush1.bf16.xpose.msra.mxu0 0
        %1012 = vmatprep.subr.bf16.mxu0 0
        %1013 = vmatpush1.bf16.xpose.msra.mxu0 0
        %1014 = vmatprep.subr.bf16.mxu0 0
        %1015 = vmatpush1.bf16.xpose.msra.mxu0 0
        %1016 = vmatprep.subr.bf16.mxu0 0
        %1017 = vmatpush1.bf16.xpose.msra.mxu0 0
        %1018 = vmatprep.subr.bf16.mxu0 0
        %1019 = vmatpush1.bf16.xpose.msra.mxu0 0
        %1020 = vmatprep.subr.bf16.mxu0 0
        %1021 = vmatpush1.bf16.xpose.msra.mxu0 0
        %1022 = vmatprep.subr.bf16.mxu0 0
        %1023 = vmatpush1.bf16.xpose.msra.mxu0 0
        %1024 = vmatprep.subr.bf16.mxu0 0
        %1025 = vmatpush1.bf16.xpose.msra.mxu0 0
        %1026 = vmatprep.subr.bf16.mxu0 0
        %1027 = vmatpush1.bf16.xpose.msra.mxu0 0
        %1028 = vmatprep.mubr.bf16.mxu0 0
        %1029 = vmatmul.mubr.bf16.gmra.mrb[0].mxu0 %v991
        %v1030 = vpop.f32.mrb[0].mxu0
        %v1031 = vadd.f32 %v763, %v1030
        %v1032 = vpop.f32.mrb[0].mxu0
        %v1033 = vpop.f32.mrb[0].mxu0
        %v1034 = vadd.f32 %v764, %v1033
        %v1035 = vpop.f32.mrb[0].mxu0
        %1036 = vdwg.mxu0
        %v1037 = vsel %vm901, %v1031, -inf
        %1038 = vmax.xlane.f32.xlu0 %v1037
        %v1039 = vpop.xlane.xlu0 %1038
        %v1040 = vsel %vm901, %v1034, -inf
        %1041 = vmax.xlane.f32.xlu0 %v1040
        %v1042 = vpop.xlane.xlu0 %1041
        %v1043 = vsub.f32 %v1031, %v1039
        %v1044 = vsub.f32 %v1034, %v1042
        %v1045 = vmul.f32 %v1043, 1.442695
        %v1046 = vpow.pop %v1045
        %v1047 = vmul.f32 %v1044, 1.442695
        %v1048 = vpow.pop %v1047
        %v1049 = vmul.f32 %v759, %v1046
        %v1050 = vmul.f32 %v760, %v1048
        %v1051 = vsel %vm901, %v1049, 0.0
        %1052 = vadd.xlane.f32.xlu0 %v1051
        %v1053 = vpop.xlane.xlu0 %1052
        %v1054 = vsel %vm901, %v1050, 0.0
        %1055 = vadd.xlane.f32.xlu0 %v1054
        %v1056 = vpop.xlane.xlu0 %1055
        %v1057 = vpack.c.bf16 %v1050, %v1049
        %1058 = vrot.lane.b32.xlu0 %v849, 56
        %v1059 = vpop.permute.xlu0 %1058
        %v1062 = vsel %vm901, %v1057, 0
        %1064 = vmatprep.subr.bf16.mxu0 0
        %1065 = vmatpush1.bf16.msra.mxu0 %v1059
        %1066 = vmatprep.subr.bf16.mxu0 0
        %1067 = vmatpush1.bf16.msra.mxu0 0
        %1068 = vmatprep.subr.bf16.mxu0 0
        %1069 = vmatpush1.bf16.msra.mxu0 0
        %1070 = vmatprep.subr.bf16.mxu0 0
        %1071 = vmatpush1.bf16.msra.mxu0 0
        %1072 = vmatprep.subr.bf16.mxu0 0
        %1073 = vmatpush1.bf16.msra.mxu0 0
        %1074 = vmatprep.subr.bf16.mxu0 0
        %1075 = vmatpush1.bf16.msra.mxu0 0
        %1076 = vmatprep.subr.bf16.mxu0 0
        %1077 = vmatpush1.bf16.msra.mxu0 0
        %1078 = vmatprep.subr.bf16.mxu0 0
        %1079 = vmatpush1.bf16.msra.mxu0 0
        %1080 = vmatprep.subr.bf16.mxu0 0
        %1081 = vmatpush1.bf16.msra.mxu0 0
        %1082 = vmatprep.subr.bf16.mxu0 0
        %1083 = vmatpush1.bf16.msra.mxu0 0
        %1084 = vmatprep.subr.bf16.mxu0 0
        %1085 = vmatpush1.bf16.msra.mxu0 0
        %1086 = vmatprep.subr.bf16.mxu0 0
        %1087 = vmatpush1.bf16.msra.mxu0 0
        %1088 = vmatprep.subr.bf16.mxu0 0
        %1089 = vmatpush1.bf16.msra.mxu0 0
        %1090 = vmatprep.subr.bf16.mxu0 0
        %1091 = vmatpush1.bf16.msra.mxu0 0
        %1092 = vmatprep.subr.bf16.mxu0 0
        %1093 = vmatpush1.bf16.msra.mxu0 0
        %1094 = vmatprep.subr.bf16.mxu0 0
        %1095 = vmatpush1.bf16.msra.mxu0 0
        %1096 = vmatprep.mubr.bf16.mxu0 0
        %1097 = vmatmul.mubr.bf16.gmra.mrb[0].mxu0 %v1062
        %v1098 = vpop.f32.mrb[0].mxu0
        %v1099 = vadd.f32 0.0, %v1098
        %v1100 = vpop.f32.mrb[0].mxu0
        %v1101 = vpop.f32.mrb[0].mxu0
        %v1102 = vadd.f32 0.0, %v1101
        %v1103 = vpop.f32.mrb[0].mxu0
        %1104 = vdwg.mxu0
        %v1105 = vmax.f32 %v1053, 1e-30
        %v1106 = vmax.f32 %v1056, 1e-30
        %v1107 = vrcp.pop %v1105
        %v1108 = vrcp.pop %v1106
        %vm1109 = vcmp.gt.f32.partialorder %v1053, 0.0
        %vm1110 = vcmp.gt.f32.partialorder %v1056, 0.0
        %v1111 = vmul.f32 %v1099, %v1107
        %v1112 = vmul.f32 %v1102, %v1108
        %v1113 = vsel %vm1109, 1, 0
        %v1114 = vsel %vm1110, 1, 0
        %vm1115 = vcmp.eq.s32.totalorder %v1113, 1
        %vm1116 = vcmp.eq.s32.totalorder %v1114, 1
        %v1117 = vsel %vm1115, %v1111, 0.0
        %v1118 = vsel %vm1116, %v1112, 0.0
        %1121 = vrot.lane.b32.xlu0 %v1117, 8
        %v1122 = vpop.permute.xlu0 %1121
        %1123 = vrot.lane.b32.xlu0 %v1118, 8
        %v1124 = vpop.permute.xlu0 %1123
        %vm1127 = vcmask 130112
        %1128 = vst.msk [vmem:[#allocation3] sm:$0xff] %vm1127, %v1122
        %1129 = vst.msk [vmem:[#allocation3 + $0x8] sm:$0xff] %vm1127, %v1124
        %1130 = vrot.lane.b32.xlu0 %v849, 112
        %v1131 = vpop.permute.xlu0 %1130
        %1132 = vrot.lane.b32.xlu0 %v849, 80
        %v1133 = vpop.permute.xlu0 %1132
        %v1135 = vsel %vm853, %v1131, 0
        %v1138 = vsel %vm853, %v1133, 0
        %1140 = vmatprep.subr.bf16.mxu0 0
        %1141 = vmatpush1.bf16.xpose.msra.mxu0 %v1138
        %1142 = vmatprep.subr.bf16.mxu0 0
        %1143 = vmatpush1.bf16.xpose.msra.mxu0 0
        %1144 = vmatprep.subr.bf16.mxu0 0
        %1145 = vmatpush1.bf16.xpose.msra.mxu0 0
        %1146 = vmatprep.subr.bf16.mxu0 0
        %1147 = vmatpush1.bf16.xpose.msra.mxu0 0
        %1148 = vmatprep.subr.bf16.mxu0 0
        %1149 = vmatpush1.bf16.xpose.msra.mxu0 0
        %1150 = vmatprep.subr.bf16.mxu0 0
        %1151 = vmatpush1.bf16.xpose.msra.mxu0 0
        %1152 = vmatprep.subr.bf16.mxu0 0
        %1153 = vmatpush1.bf16.xpose.msra.mxu0 0
        %1154 = vmatprep.subr.bf16.mxu0 0
        %1155 = vmatpush1.bf16.xpose.msra.mxu0 0
        %1156 = vmatprep.subr.bf16.mxu0 0
        %1157 = vmatpush1.bf16.xpose.msra.mxu0 0
        %1158 = vmatprep.subr.bf16.mxu0 0
        %1159 = vmatpush1.bf16.xpose.msra.mxu0 0
        %1160 = vmatprep.subr.bf16.mxu0 0
        %1161 = vmatpush1.bf16.xpose.msra.mxu0 0
        %1162 = vmatprep.subr.bf16.mxu0 0
        %1163 = vmatpush1.bf16.xpose.msra.mxu0 0
        %1164 = vmatprep.subr.bf16.mxu0 0
        %1165 = vmatpush1.bf16.xpose.msra.mxu0 0
        %1166 = vmatprep.subr.bf16.mxu0 0
        %1167 = vmatpush1.bf16.xpose.msra.mxu0 0
        %1168 = vmatprep.subr.bf16.mxu0 0
        %1169 = vmatpush1.bf16.xpose.msra.mxu0 0
        %1170 = vmatprep.subr.bf16.mxu0 0
        %1171 = vmatpush1.bf16.xpose.msra.mxu0 0
        %1172 = vmatprep.mubr.bf16.mxu0 0
        %1173 = vmatmul.mubr.bf16.gmra.mrb[0].mxu0 %v1135
        %v1174 = vpop.f32.mrb[0].mxu0
        %v1175 = vadd.f32 %v763, %v1174
        %v1176 = vpop.f32.mrb[0].mxu0
        %v1177 = vpop.f32.mrb[0].mxu0
        %v1178 = vadd.f32 %v764, %v1177
        %v1179 = vpop.f32.mrb[0].mxu0
        %1180 = vdwg.mxu0
        %v1181 = vsel %vm901, %v1175, -inf
        %1182 = vmax.xlane.f32.xlu0 %v1181
        %v1183 = vpop.xlane.xlu0 %1182
        %v1184 = vsel %vm901, %v1178, -inf
        %1185 = vmax.xlane.f32.xlu0 %v1184
        %v1186 = vpop.xlane.xlu0 %1185
        %v1187 = vsub.f32 %v1175, %v1183
        %v1188 = vsub.f32 %v1178, %v1186
        %v1189 = vmul.f32 %v1187, 1.442695
        %v1190 = vpow.pop %v1189
        %v1191 = vmul.f32 %v1188, 1.442695
        %v1192 = vpow.pop %v1191
        %v1193 = vmul.f32 %v759, %v1190
        %v1194 = vmul.f32 %v760, %v1192
        %v1195 = vsel %vm901, %v1193, 0.0
        %1196 = vadd.xlane.f32.xlu0 %v1195
        %v1197 = vpop.xlane.xlu0 %1196
        %v1198 = vsel %vm901, %v1194, 0.0
        %1199 = vadd.xlane.f32.xlu0 %v1198
        %v1200 = vpop.xlane.xlu0 %1199
        %v1201 = vpack.c.bf16 %v1194, %v1193
        %1202 = vrot.lane.b32.xlu0 %v849, 48
        %v1203 = vpop.permute.xlu0 %1202
        %v1206 = vsel %vm901, %v1201, 0
        %1208 = vmatprep.subr.bf16.mxu0 0
        %1209 = vmatpush1.bf16.msra.mxu0 %v1203
        %1210 = vmatprep.subr.bf16.mxu0 0
        %1211 = vmatpush1.bf16.msra.mxu0 0
        %1212 = vmatprep.subr.bf16.mxu0 0
        %1213 = vmatpush1.bf16.msra.mxu0 0
        %1214 = vmatprep.subr.bf16.mxu0 0
        %1215 = vmatpush1.bf16.msra.mxu0 0
        %1216 = vmatprep.subr.bf16.mxu0 0
        %1217 = vmatpush1.bf16.msra.mxu0 0
        %1218 = vmatprep.subr.bf16.mxu0 0
        %1219 = vmatpush1.bf16.msra.mxu0 0
        %1220 = vmatprep.subr.bf16.mxu0 0
        %1221 = vmatpush1.bf16.msra.mxu0 0
        %1222 = vmatprep.subr.bf16.mxu0 0
        %1223 = vmatpush1.bf16.msra.mxu0 0
        %1224 = vmatprep.subr.bf16.mxu0 0
        %1225 = vmatpush1.bf16.msra.mxu0 0
        %1226 = vmatprep.subr.bf16.mxu0 0
        %1227 = vmatpush1.bf16.msra.mxu0 0
        %1228 = vmatprep.subr.bf16.mxu0 0
        %1229 = vmatpush1.bf16.msra.mxu0 0
        %1230 = vmatprep.subr.bf16.mxu0 0
        %1231 = vmatpush1.bf16.msra.mxu0 0
        %1232 = vmatprep.subr.bf16.mxu0 0
        %1233 = vmatpush1.bf16.msra.mxu0 0
        %1234 = vmatprep.subr.bf16.mxu0 0
        %1235 = vmatpush1.bf16.msra.mxu0 0
        %1236 = vmatprep.subr.bf16.mxu0 0
        %1237 = vmatpush1.bf16.msra.mxu0 0
        %1238 = vmatprep.subr.bf16.mxu0 0
        %1239 = vmatpush1.bf16.msra.mxu0 0
        %1240 = vmatprep.mubr.bf16.mxu0 0
        %1241 = vmatmul.mubr.bf16.gmra.mrb[0].mxu0 %v1206
        %v1242 = vpop.f32.mrb[0].mxu0
        %v1243 = vadd.f32 0.0, %v1242
        %v1244 = vpop.f32.mrb[0].mxu0
        %v1245 = vpop.f32.mrb[0].mxu0
        %v1246 = vadd.f32 0.0, %v1245
        %v1247 = vpop.f32.mrb[0].mxu0
        %1248 = vdwg.mxu0
        %v1249 = vmax.f32 %v1197, 1e-30
        %v1250 = vmax.f32 %v1200, 1e-30
        %v1251 = vrcp.pop %v1249
        %v1252 = vrcp.pop %v1250
        %vm1253 = vcmp.gt.f32.partialorder %v1197, 0.0
        %vm1254 = vcmp.gt.f32.partialorder %v1200, 0.0
        %v1255 = vmul.f32 %v1243, %v1251
        %v1256 = vmul.f32 %v1246, %v1252
        %v1257 = vsel %vm1253, 1, 0
        %v1258 = vsel %vm1254, 1, 0
        %vm1259 = vcmp.eq.s32.totalorder %v1257, 1
        %vm1260 = vcmp.eq.s32.totalorder %v1258, 1
        %v1261 = vsel %vm1259, %v1255, 0.0
        %v1262 = vsel %vm1260, %v1256, 0.0
        %1265 = vrot.lane.b32.xlu0 %v1261, 16
        %v1266 = vpop.permute.xlu0 %1265
        %1267 = vrot.lane.b32.xlu0 %v1262, 16
        %v1268 = vpop.permute.xlu0 %1267
        %vm1271 = vcmask 195712
        %1272 = vst.msk [vmem:[#allocation3] sm:$0xff] %vm1271, %v1266
        %1273 = vst.msk [vmem:[#allocation3 + $0x8] sm:$0xff] %vm1271, %v1268
        %1274 = vrot.lane.b32.xlu0 %v849, 104
        %v1275 = vpop.permute.xlu0 %1274
        %1276 = vrot.lane.b32.xlu0 %v849, 72
        %v1277 = vpop.permute.xlu0 %1276
        %v1279 = vsel %vm853, %v1275, 0
        %v1282 = vsel %vm853, %v1277, 0
        %1284 = vmatprep.subr.bf16.mxu0 0
        %1285 = vmatpush1.bf16.xpose.msra.mxu0 %v1282
        %1286 = vmatprep.subr.bf16.mxu0 0
        %1287 = vmatpush1.bf16.xpose.msra.mxu0 0
        %1288 = vmatprep.subr.bf16.mxu0 0
        %1289 = vmatpush1.bf16.xpose.msra.mxu0 0
        %1290 = vmatprep.subr.bf16.mxu0 0
        %1291 = vmatpush1.bf16.xpose.msra.mxu0 0
        %1292 = vmatprep.subr.bf16.mxu0 0
        %1293 = vmatpush1.bf16.xpose.msra.mxu0 0
        %1294 = vmatprep.subr.bf16.mxu0 0
        %1295 = vmatpush1.bf16.xpose.msra.mxu0 0
        %1296 = vmatprep.subr.bf16.mxu0 0
        %1297 = vmatpush1.bf16.xpose.msra.mxu0 0
        %1298 = vmatprep.subr.bf16.mxu0 0
        %1299 = vmatpush1.bf16.xpose.msra.mxu0 0
        %1300 = vmatprep.subr.bf16.mxu0 0
        %1301 = vmatpush1.bf16.xpose.msra.mxu0 0
        %1302 = vmatprep.subr.bf16.mxu0 0
        %1303 = vmatpush1.bf16.xpose.msra.mxu0 0
        %1304 = vmatprep.subr.bf16.mxu0 0
        %1305 = vmatpush1.bf16.xpose.msra.mxu0 0
        %1306 = vmatprep.subr.bf16.mxu0 0
        %1307 = vmatpush1.bf16.xpose.msra.mxu0 0
        %1308 = vmatprep.subr.bf16.mxu0 0
        %1309 = vmatpush1.bf16.xpose.msra.mxu0 0
        %1310 = vmatprep.subr.bf16.mxu0 0
        %1311 = vmatpush1.bf16.xpose.msra.mxu0 0
        %1312 = vmatprep.subr.bf16.mxu0 0
        %1313 = vmatpush1.bf16.xpose.msra.mxu0 0
        %1314 = vmatprep.subr.bf16.mxu0 0
        %1315 = vmatpush1.bf16.xpose.msra.mxu0 0
        %1316 = vmatprep.mubr.bf16.mxu0 0
        %1317 = vmatmul.mubr.bf16.gmra.mrb[0].mxu0 %v1279
        %v1318 = vpop.f32.mrb[0].mxu0
        %v1319 = vadd.f32 %v763, %v1318
        %v1320 = vpop.f32.mrb[0].mxu0
        %v1321 = vpop.f32.mrb[0].mxu0
        %v1322 = vadd.f32 %v764, %v1321
        %v1323 = vpop.f32.mrb[0].mxu0
        %1324 = vdwg.mxu0
        %v1325 = vsel %vm901, %v1319, -inf
        %1326 = vmax.xlane.f32.xlu0 %v1325
        %v1327 = vpop.xlane.xlu0 %1326
        %v1328 = vsel %vm901, %v1322, -inf
        %1329 = vmax.xlane.f32.xlu0 %v1328
        %v1330 = vpop.xlane.xlu0 %1329
        %v1331 = vsub.f32 %v1319, %v1327
        %v1332 = vsub.f32 %v1322, %v1330
        %v1333 = vmul.f32 %v1331, 1.442695
        %v1334 = vpow.pop %v1333
        %v1335 = vmul.f32 %v1332, 1.442695
        %v1336 = vpow.pop %v1335
        %v1337 = vmul.f32 %v759, %v1334
        %v1338 = vmul.f32 %v760, %v1336
        %v1339 = vsel %vm901, %v1337, 0.0
        %1340 = vadd.xlane.f32.xlu0 %v1339
        %v1341 = vpop.xlane.xlu0 %1340
        %v1342 = vsel %vm901, %v1338, 0.0
        %1343 = vadd.xlane.f32.xlu0 %v1342
        %v1344 = vpop.xlane.xlu0 %1343
        %v1345 = vpack.c.bf16 %v1338, %v1337
        %1346 = vrot.lane.b32.xlu0 %v849, 40
        %v1347 = vpop.permute.xlu0 %1346
        %v1350 = vsel %vm901, %v1345, 0
        %1352 = vmatprep.subr.bf16.mxu0 0
        %1353 = vmatpush1.bf16.msra.mxu0 %v1347
        %1354 = vmatprep.subr.bf16.mxu0 0
        %1355 = vmatpush1.bf16.msra.mxu0 0
        %1356 = vmatprep.subr.bf16.mxu0 0
        %1357 = vmatpush1.bf16.msra.mxu0 0
        %1358 = vmatprep.subr.bf16.mxu0 0
        %1359 = vmatpush1.bf16.msra.mxu0 0
        %1360 = vmatprep.subr.bf16.mxu0 0
        %1361 = vmatpush1.bf16.msra.mxu0 0
        %1362 = vmatprep.subr.bf16.mxu0 0
        %1363 = vmatpush1.bf16.msra.mxu0 0
        %1364 = vmatprep.subr.bf16.mxu0 0
        %1365 = vmatpush1.bf16.msra.mxu0 0
        %1366 = vmatprep.subr.bf16.mxu0 0
        %1367 = vmatpush1.bf16.msra.mxu0 0
        %1368 = vmatprep.subr.bf16.mxu0 0
        %1369 = vmatpush1.bf16.msra.mxu0 0
        %1370 = vmatprep.subr.bf16.mxu0 0
        %1371 = vmatpush1.bf16.msra.mxu0 0
        %1372 = vmatprep.subr.bf16.mxu0 0
        %1373 = vmatpush1.bf16.msra.mxu0 0
        %1374 = vmatprep.subr.bf16.mxu0 0
        %1375 = vmatpush1.bf16.msra.mxu0 0
        %1376 = vmatprep.subr.bf16.mxu0 0
        %1377 = vmatpush1.bf16.msra.mxu0 0
        %1378 = vmatprep.subr.bf16.mxu0 0
        %1379 = vmatpush1.bf16.msra.mxu0 0
        %1380 = vmatprep.subr.bf16.mxu0 0
        %1381 = vmatpush1.bf16.msra.mxu0 0
        %1382 = vmatprep.subr.bf16.mxu0 0
        %1383 = vmatpush1.bf16.msra.mxu0 0
        %1384 = vmatprep.mubr.bf16.mxu0 0
        %1385 = vmatmul.mubr.bf16.gmra.mrb[0].mxu0 %v1350
        %v1386 = vpop.f32.mrb[0].mxu0
        %v1387 = vadd.f32 0.0, %v1386
        %v1388 = vpop.f32.mrb[0].mxu0
        %v1389 = vpop.f32.mrb[0].mxu0
        %v1390 = vadd.f32 0.0, %v1389
        %v1391 = vpop.f32.mrb[0].mxu0
        %1392 = vdwg.mxu0
        %v1393 = vmax.f32 %v1341, 1e-30
        %v1394 = vmax.f32 %v1344, 1e-30
        %v1395 = vrcp.pop %v1393
        %v1396 = vrcp.pop %v1394
        %vm1397 = vcmp.gt.f32.partialorder %v1341, 0.0
        %vm1398 = vcmp.gt.f32.partialorder %v1344, 0.0
        %v1399 = vmul.f32 %v1387, %v1395
        %v1400 = vmul.f32 %v1390, %v1396
        %v1401 = vsel %vm1397, 1, 0
        %v1402 = vsel %vm1398, 1, 0
        %vm1403 = vcmp.eq.s32.totalorder %v1401, 1
        %vm1404 = vcmp.eq.s32.totalorder %v1402, 1
        %v1405 = vsel %vm1403, %v1399, 0.0
        %v1406 = vsel %vm1404, %v1400, 0.0
        %1409 = vrot.lane.b32.xlu0 %v1405, 24
        %v1410 = vpop.permute.xlu0 %1409
        %1411 = vrot.lane.b32.xlu0 %v1406, 24
        %v1412 = vpop.permute.xlu0 %1411
        %vm1415 = vcmask 261312
        %1416 = vst.msk [vmem:[#allocation3] sm:$0xff] %vm1415, %v1410
        %1417 = vst.msk [vmem:[#allocation3 + $0x8] sm:$0xff] %vm1415, %v1412
        %v1418 = vld [vmem:[#allocation3] sm:$0xff]
        %v1419 = vld [vmem:[#allocation3 + $0x8] sm:$0xff]
        %v1420 = vld [vmem:[%s582] sm:$0x3]
        %v1421 = vlaneseq
        %v1422 = vshrl.u32 %v1421, 7
        %v1423 = vsub.s32 0, %v1422
        %v1424 = vrot.slane %v1420, %v1423
        %v1425 = vmul.f32 %v1418, %v1424
        %v1426 = vmul.f32 %v1419, %v1424
        %v1427 = vsel %vm802, %v1425, 0.0
        %1428 = vadd.xlane.f32.xlu0 %v1427
        %v1429 = vpop.xlane.xlu0 %1428
        %v1430 = vsel %vm802, %v1426, 0.0
        %1431 = vadd.xlane.f32.xlu0 %v1430
        %v1432 = vpop.xlane.xlu0 %1431
        %v1433 = vlaneseq
        %v1434 = vshrl.u32 %v1433, 7
        %v1435 = vsub.s32 1, %v1434
        %v1436 = vrot.slane %v1420, %v1435
        %1438 = vrot.lane.b32.xlu0 %v1436, 96
        %v1439 = vpop.permute.xlu0 %1438
        %v1441 = vmul.f32 %v841, %v1439
        %v1442 = vmul.f32 %v845, %v1439
        %1445 = vrot.lane.b32.xlu0 %v1441, 32
        %v1446 = vpop.permute.xlu0 %1445
        %1447 = vrot.lane.b32.xlu0 %v1442, 32
        %v1448 = vpop.permute.xlu0 %1447
        %v1451 = vsel %vm802, %v1446, 0.0
        %1452 = vadd.xlane.f32.xlu0 %v1451
        %v1453 = vpop.xlane.xlu0 %1452
        %v1454 = vsel %vm802, %v1448, 0.0
        %1455 = vadd.xlane.f32.xlu0 %v1454
        %v1456 = vpop.xlane.xlu0 %1455
        %v1457 = vadd.f32 %v1429, %v1453
        %v1458 = vadd.f32 %v1432, %v1456
        %v1459 = vxor.u32 %v1457, 2147483648
        %v1460 = vxor.u32 %v1458, 2147483648
        %v1461 = vmul.f32 %v1459, 1.442695
        %v1462 = vpow.pop %v1461
        %v1463 = vmul.f32 %v1460, 1.442695
        %v1464 = vpow.pop %v1463
        %v1465 = vadd.f32 %v1462, 1.0
        %v1466 = vadd.f32 %v1464, 1.0
        %v1467 = vrcp.pop %v1465
        %v1468 = vmul.f32 1.0, %v1467
        %v1469 = vrcp.pop %v1466
        %v1470 = vmul.f32 1.0, %v1469
        %v1471 = vmul.f32 %v1468, %v841
        %v1472 = vmul.f32 %v1470, %v845
        %v1473 = vsub.f32 1.0, %v1468
        %v1474 = vsub.f32 1.0, %v1470
        %v1475 = vmul.f32 %v1473, %v1418
        %v1476 = vmul.f32 %v1474, %v1419
        %1479 = vrot.lane.b32.xlu0 %v1475, 96
        %v1480 = vpop.permute.xlu0 %1479
        %1481 = vrot.lane.b32.xlu0 %v1476, 96
        %v1482 = vpop.permute.xlu0 %1481
        %v1485 = vadd.f32 %v1471, %v1480
        %v1486 = vadd.f32 %v1472, %v1482
        %v1487 = vld [vmem:[%s686] sm:$0x3f]
        %1490 = vrot.lane.b32.xlu0 %v755, 96
        %v1491 = vpop.permute.xlu0 %1490
        %1492 = vrot.lane.b32.xlu0 %v756, 96
        %v1493 = vpop.permute.xlu0 %1492
        %v1496 = vadd.f32 %v1485, %v1491
        %v1497 = vadd.f32 %v1486, %v1493
        %1500 = vrot.lane.b32.xlu0 %v1496, 32
        %v1501 = vpop.permute.xlu0 %1500
        %1502 = vrot.lane.b32.xlu0 %v1497, 32
        %v1503 = vpop.permute.xlu0 %1502
        %v1506 = vsel %vm802, %v1501, 0.0
        %1507 = vadd.xlane.f32.xlu0 %v1506
        %v1508 = vpop.xlane.xlu0 %1507
        %v1509 = vsel %vm802, %v1503, 0.0
        %1510 = vadd.xlane.f32.xlu0 %v1509
        %v1511 = vpop.xlane.xlu0 %1510
        %v1512 = vrcp.pop 32.0
        %v1513 = vmul.f32 %v1508, %v1512
        %v1514 = vmul.f32 %v1511, %v1512
        %v1515 = vsub.f32 %v1496, %v1513
        %v1516 = vsub.f32 %v1497, %v1514
        %v1517 = vmul.f32 %v1515, %v1515
        %v1518 = vmul.f32 %v1516, %v1516
        %1521 = vrot.lane.b32.xlu0 %v1517, 32
        %v1522 = vpop.permute.xlu0 %1521
        %1523 = vrot.lane.b32.xlu0 %v1518, 32
        %v1524 = vpop.permute.xlu0 %1523
        %v1527 = vsel %vm802, %v1522, 0.0
        %1528 = vadd.xlane.f32.xlu0 %v1527
        %v1529 = vpop.xlane.xlu0 %1528
        %v1530 = vsel %vm802, %v1524, 0.0
        %1531 = vadd.xlane.f32.xlu0 %v1530
        %v1532 = vpop.xlane.xlu0 %1531
        %v1533 = vmul.f32 %v1529, %v1512
        %v1534 = vmul.f32 %v1532, %v1512
        %v1535 = vadd.f32 %v1533, 1e-05
        %v1536 = vadd.f32 %v1534, 1e-05
        %v1537 = vrsqrt.pop %v1535
        %v1538 = vrsqrt.pop %v1536
        %v1539 = vmul.f32 %v1515, %v1537
        %v1540 = vmul.f32 %v1516, %v1538
        %v1541 = vlaneseq
        %v1542 = vshrl.u32 %v1541, 7
        %v1543 = vsub.s32 0, %v1542
        %v1544 = vrot.slane %v1487, %v1543
        %1546 = vrot.lane.b32.xlu0 %v1544, 96
        %v1547 = vpop.permute.xlu0 %1546
        %v1549 = vmul.f32 %v1539, %v1547
        %v1550 = vmul.f32 %v1540, %v1547
        %v1551 = vlaneseq
        %v1552 = vshrl.u32 %v1551, 7
        %v1553 = vsub.s32 1, %v1552
        %v1554 = vrot.slane %v1487, %v1553
        %1556 = vrot.lane.b32.xlu0 %v1554, 96
        %v1557 = vpop.permute.xlu0 %1556
        %v1559 = vadd.f32 %v1549, %v1557
        %v1560 = vadd.f32 %v1550, %v1557
        %v1561 = vadd.f32 %v843, %v755
        %v1562 = vadd.f32 %v847, %v756
        %v1563 = vsel %vm802, %v1561, 0.0
        %1564 = vadd.xlane.f32.xlu0 %v1563
        %v1565 = vpop.xlane.xlu0 %1564
        %v1566 = vsel %vm802, %v1562, 0.0
        %1567 = vadd.xlane.f32.xlu0 %v1566
        %v1568 = vpop.xlane.xlu0 %1567
        %v1569 = vmul.f32 %v1565, %v1512
        %v1570 = vmul.f32 %v1568, %v1512
        %v1571 = vsub.f32 %v1561, %v1569
        %v1572 = vsub.f32 %v1562, %v1570
        %v1573 = vmul.f32 %v1571, %v1571
        %v1574 = vmul.f32 %v1572, %v1572
        %v1575 = vsel %vm802, %v1573, 0.0
        %1576 = vadd.xlane.f32.xlu0 %v1575
        %v1577 = vpop.xlane.xlu0 %1576
        %v1578 = vsel %vm802, %v1574, 0.0
        %1579 = vadd.xlane.f32.xlu0 %v1578
        %v1580 = vpop.xlane.xlu0 %1579
        %v1581 = vmul.f32 %v1577, %v1512
        %v1582 = vmul.f32 %v1580, %v1512
        %v1583 = vadd.f32 %v1581, 1e-05
        %v1584 = vadd.f32 %v1582, 1e-05
        %v1585 = vrsqrt.pop %v1583
        %v1586 = vrsqrt.pop %v1584
        %v1587 = vmul.f32 %v1571, %v1585
        %v1588 = vmul.f32 %v1572, %v1586
        %v1589 = vlaneseq
        %v1590 = vshrl.u32 %v1589, 7
        %v1591 = vsub.s32 2, %v1590
        %v1592 = vrot.slane %v1487, %v1591
        %v1593 = vmul.f32 %v1587, %v1592
        %v1594 = vmul.f32 %v1588, %v1592
        %v1595 = vlaneseq
        %v1596 = vshrl.u32 %v1595, 7
        %v1597 = vsub.s32 3, %v1596
        %v1598 = vrot.slane %v1487, %v1597
        %v1599 = vadd.f32 %v1593, %v1598
        %v1600 = vadd.f32 %v1594, %v1598
        %1603 = vrot.lane.b32.xlu0 %v1599, 96
        %v1604 = vpop.permute.xlu0 %1603
        %1605 = vrot.lane.b32.xlu0 %v1600, 96
        %v1606 = vpop.permute.xlu0 %1605
        %v1609 = vadd.f32 %v1559, %v1604
        %v1610 = vadd.f32 %v1560, %v1606
        %v1611 = vpack.c.bf16 %v1610, %v1609
        %v1612 = vld [vmem:[%s679] sm:$0xf]
        %v1613 = vld [vmem:[%s679 + $0x4] sm:$0xf]
        %v1614 = vld [vmem:[%s679 + $0x8] sm:$0xf]
        %v1615 = vld [vmem:[%s679 + $0xc] sm:$0xf]
        %v1616 = vld [vmem:[%s590] sm:$0x1]
        %v1618 = vlaneseq
        %v1619 = vshrl.u32 %v1618, 7
        %v1620 = vsub.s32 0, %v1619
        %v1621 = vrot.slane %v1616, %v1620
        %1624 = vrot.lane.b32.xlu0 %v1611, 32
        %v1625 = vpop.permute.xlu0 %1624
        %v1630 = vunpack.c.l.b16 %v1612
        %v1631 = vunpack.c.l.b16 %v1613
        %v1632 = vunpack.c.l.b16 %v1614
        %v1633 = vunpack.c.l.b16 %v1615
        %v1634 = vpack.c.b16 %v1631, %v1630
        %v1635 = vpack.c.b16 %v1633, %v1632
        %v1639 = vsel %vm802, %v1625, 0
        %1641 = vmatprep.subr.bf16.mxu0 0
        %1642 = vmatpush1.bf16.msra.mxu0 %v1634
        %1643 = vmatprep.subr.bf16.mxu0 0
        %1644 = vmatpush1.bf16.msra.mxu0 %v1635
        %1645 = vmatprep.subr.bf16.mxu0 0
        %1646 = vmatpush1.bf16.msra.mxu0 0
        %1647 = vmatprep.subr.bf16.mxu0 0
        %1648 = vmatpush1.bf16.msra.mxu0 0
        %1649 = vmatprep.subr.bf16.mxu0 0
        %1650 = vmatpush1.bf16.msra.mxu0 0
        %1651 = vmatprep.subr.bf16.mxu0 0
        %1652 = vmatpush1.bf16.msra.mxu0 0
        %1653 = vmatprep.subr.bf16.mxu0 0
        %1654 = vmatpush1.bf16.msra.mxu0 0
        %1655 = vmatprep.subr.bf16.mxu0 0
        %1656 = vmatpush1.bf16.msra.mxu0 0
        %1657 = vmatprep.subr.bf16.mxu0 0
        %1658 = vmatpush1.bf16.msra.mxu0 0
        %1659 = vmatprep.subr.bf16.mxu0 0
        %1660 = vmatpush1.bf16.msra.mxu0 0
        %1661 = vmatprep.subr.bf16.mxu0 0
        %1662 = vmatpush1.bf16.msra.mxu0 0
        %1663 = vmatprep.subr.bf16.mxu0 0
        %1664 = vmatpush1.bf16.msra.mxu0 0
        %1665 = vmatprep.subr.bf16.mxu0 0
        %1666 = vmatpush1.bf16.msra.mxu0 0
        %1667 = vmatprep.subr.bf16.mxu0 0
        %1668 = vmatpush1.bf16.msra.mxu0 0
        %1669 = vmatprep.subr.bf16.mxu0 0
        %1670 = vmatpush1.bf16.msra.mxu0 0
        %1671 = vmatprep.subr.bf16.mxu0 0
        %1672 = vmatpush1.bf16.msra.mxu0 0
        %1673 = vmatprep.mubr.bf16.mxu0 0
        %1674 = vmatmul.mubr.bf16.gmra.mrb[0].mxu0 %v1639
        %v1675 = vpop.f32.mrb[0].mxu0
        %v1676 = vadd.f32 %v1621, %v1675
        %v1677 = vpop.f32.mrb[0].mxu0
        %v1678 = vpop.f32.mrb[0].mxu0
        %v1679 = vadd.f32 %v1621, %v1678
        %v1680 = vpop.f32.mrb[0].mxu0
        %1681 = vdwg.mxu0
        %v1682 = vmax.f32 %v1676, 0.0
        %v1683 = vmax.f32 %v1679, 0.0
        %v1684 = vpack.c.bf16 %v1683, %v1682
        %v1685 = vld [vmem:[%s599] sm:$0xf]
        %v1686 = vld [vmem:[%s599 + $0x4] sm:$0xf]
        %v1687 = vld [vmem:[%s599 + $0x8] sm:$0xf]
        %v1688 = vld [vmem:[%s599 + $0xc] sm:$0xf]
        %v1689 = vld [vmem:[%s682] sm:$0x1]
        %v1691 = vlaneseq
        %v1692 = vshrl.u32 %v1691, 7
        %v1693 = vsub.s32 0, %v1692
        %v1694 = vrot.slane %v1689, %v1693
        %v1700 = vunpack.c.l.b16 %v1685
        %v1701 = vunpack.c.l.b16 %v1686
        %v1702 = vunpack.c.l.b16 %v1687
        %v1703 = vunpack.c.l.b16 %v1688
        %v1704 = vpack.c.b16 %v1701, %v1700
        %v1705 = vpack.c.b16 %v1703, %v1702
        %v1709 = vsel %vm802, %v1684, 0
        %1711 = vmatprep.subr.bf16.mxu0 0
        %1712 = vmatpush1.bf16.msra.mxu0 %v1704
        %1713 = vmatprep.subr.bf16.mxu0 0
        %1714 = vmatpush1.bf16.msra.mxu0 %v1705
        %1715 = vmatprep.subr.bf16.mxu0 0
        %1716 = vmatpush1.bf16.msra.mxu0 0
        %1717 = vmatprep.subr.bf16.mxu0 0
        %1718 = vmatpush1.bf16.msra.mxu0 0
        %1719 = vmatprep.subr.bf16.mxu0 0
        %1720 = vmatpush1.bf16.msra.mxu0 0
        %1721 = vmatprep.subr.bf16.mxu0 0
        %1722 = vmatpush1.bf16.msra.mxu0 0
        %1723 = vmatprep.subr.bf16.mxu0 0
        %1724 = vmatpush1.bf16.msra.mxu0 0
        %1725 = vmatprep.subr.bf16.mxu0 0
        %1726 = vmatpush1.bf16.msra.mxu0 0
        %1727 = vmatprep.subr.bf16.mxu0 0
        %1728 = vmatpush1.bf16.msra.mxu0 0
        %1729 = vmatprep.subr.bf16.mxu0 0
        %1730 = vmatpush1.bf16.msra.mxu0 0
        %1731 = vmatprep.subr.bf16.mxu0 0
        %1732 = vmatpush1.bf16.msra.mxu0 0
        %1733 = vmatprep.subr.bf16.mxu0 0
        %1734 = vmatpush1.bf16.msra.mxu0 0
        %1735 = vmatprep.subr.bf16.mxu0 0
        %1736 = vmatpush1.bf16.msra.mxu0 0
        %1737 = vmatprep.subr.bf16.mxu0 0
        %1738 = vmatpush1.bf16.msra.mxu0 0
        %1739 = vmatprep.subr.bf16.mxu0 0
        %1740 = vmatpush1.bf16.msra.mxu0 0
        %1741 = vmatprep.subr.bf16.mxu0 0
        %1742 = vmatpush1.bf16.msra.mxu0 0
        %1743 = vmatprep.mubr.bf16.mxu0 0
        %1744 = vmatmul.mubr.bf16.gmra.mrb[0].mxu0 %v1709
        %v1745 = vpop.f32.mrb[0].mxu0
        %v1746 = vadd.f32 %v1694, %v1745
        %v1747 = vpop.f32.mrb[0].mxu0
        %v1748 = vpop.f32.mrb[0].mxu0
        %v1749 = vadd.f32 %v1694, %v1748
        %v1750 = vpop.f32.mrb[0].mxu0
        %1751 = vdwg.mxu0
        %1754 = vrot.lane.b32.xlu0 %v1746, 96
        %v1755 = vpop.permute.xlu0 %1754
        %1756 = vrot.lane.b32.xlu0 %v1749, 96
        %v1757 = vpop.permute.xlu0 %1756
        %v1760 = vadd.f32 %v1609, %v1755
        %v1761 = vadd.f32 %v1610, %v1757
        %1764 = vrot.lane.b32.xlu0 %v1760, 32
        %v1765 = vpop.permute.xlu0 %1764
        %1766 = vrot.lane.b32.xlu0 %v1761, 32
        %v1767 = vpop.permute.xlu0 %1766
        %v1770 = vsel %vm802, %v1765, 0.0
        %1771 = vadd.xlane.f32.xlu0 %v1770
        %v1772 = vpop.xlane.xlu0 %1771
        %v1773 = vsel %vm802, %v1767, 0.0
        %1774 = vadd.xlane.f32.xlu0 %v1773
        %v1775 = vpop.xlane.xlu0 %1774
        %v1776 = vmul.f32 %v1772, %v1512
        %v1777 = vmul.f32 %v1775, %v1512
        %v1778 = vsub.f32 %v1760, %v1776
        %v1779 = vsub.f32 %v1761, %v1777
        %v1780 = vmul.f32 %v1778, %v1778
        %v1781 = vmul.f32 %v1779, %v1779
        %1784 = vrot.lane.b32.xlu0 %v1780, 32
        %v1785 = vpop.permute.xlu0 %1784
        %1786 = vrot.lane.b32.xlu0 %v1781, 32
        %v1787 = vpop.permute.xlu0 %1786
        %v1790 = vsel %vm802, %v1785, 0.0
        %1791 = vadd.xlane.f32.xlu0 %v1790
        %v1792 = vpop.xlane.xlu0 %1791
        %v1793 = vsel %vm802, %v1787, 0.0
        %1794 = vadd.xlane.f32.xlu0 %v1793
        %v1795 = vpop.xlane.xlu0 %1794
        %v1796 = vmul.f32 %v1792, %v1512
        %v1797 = vmul.f32 %v1795, %v1512
        %v1798 = vadd.f32 %v1796, 1e-05
        %v1799 = vadd.f32 %v1797, 1e-05
        %v1800 = vrsqrt.pop %v1798
        %v1801 = vrsqrt.pop %v1799
        %v1802 = vmul.f32 %v1778, %v1800
        %v1803 = vmul.f32 %v1779, %v1801
        %v1804 = vlaneseq
        %v1805 = vshrl.u32 %v1804, 7
        %v1806 = vsub.s32 4, %v1805
        %v1807 = vrot.slane %v1487, %v1806
        %1809 = vrot.lane.b32.xlu0 %v1807, 96
        %v1810 = vpop.permute.xlu0 %1809
        %v1812 = vmul.f32 %v1802, %v1810
        %v1813 = vmul.f32 %v1803, %v1810
        %v1814 = vlaneseq
        %v1815 = vshrl.u32 %v1814, 7
        %v1816 = vsub.s32 5, %v1815
        %v1817 = vrot.slane %v1487, %v1816
        %1819 = vrot.lane.b32.xlu0 %v1817, 96
        %v1820 = vpop.permute.xlu0 %1819
        %v1822 = vadd.f32 %v1812, %v1820
        %v1823 = vadd.f32 %v1813, %v1820
        %1826 = vrot.lane.b32.xlu0 %v1822, 32
        %v1827 = vpop.permute.xlu0 %1826
        %1828 = vrot.lane.b32.xlu0 %v1823, 32
        %v1829 = vpop.permute.xlu0 %1828
        %1832 = vst.msk [vmem:[#allocation2] sm:$0xff] %vm802, %v1827
        %1833 = vst.msk [vmem:[#allocation2 + $0x8] sm:$0xff] %vm802, %v1829
        %p1834 = scmp.eq.s32.totalorder %s33, 1
        // Predicated region
        $region109: #{tpu_custom_call.1} parent=75 // pred_check
          %p1835 = pneg %p1834
        $region110: #{tpu_custom_call.1} parent=75 // pred_check_branch
          %1837 = sbr.rel (%p1835) target = $region112
        $region111: #{tpu_custom_call.1} parent=75 // pred_region
          %v1838 = vpack.c.bf16 %v1823, %v1822
          %v1839 = vld [vmem:[%s4] sm:$0xf]
          %v1840 = vld [vmem:[%s4 + $0x4] sm:$0xf]
          %v1841 = vld [vmem:[%s4 + $0x8] sm:$0xf]
          %v1842 = vld [vmem:[%s4 + $0xc] sm:$0xf]
          %v1843 = vld [vmem:[#allocation8] sm:$0x1]
          %v1845 = vlaneseq
          %v1846 = vshrl.u32 %v1845, 7
          %v1847 = vsub.s32 0, %v1846
          %v1848 = vrot.slane %v1843, %v1847
          %1851 = vrot.lane.b32.xlu0 %v1838, 32
          %v1852 = vpop.permute.xlu0 %1851
          %v1857 = vunpack.c.l.b16 %v1839
          %v1858 = vunpack.c.l.b16 %v1840
          %v1859 = vunpack.c.l.b16 %v1841
          %v1860 = vunpack.c.l.b16 %v1842
          %v1861 = vpack.c.b16 %v1858, %v1857
          %v1862 = vpack.c.b16 %v1860, %v1859
          %v1866 = vsel %vm802, %v1852, 0
          %1868 = vmatprep.subr.bf16.mxu0 0
          %1869 = vmatpush1.bf16.msra.mxu0 %v1861
          %1870 = vmatprep.subr.bf16.mxu0 0
          %1871 = vmatpush1.bf16.msra.mxu0 %v1862
          %1872 = vmatprep.subr.bf16.mxu0 0
          %1873 = vmatpush1.bf16.msra.mxu0 0
          %1874 = vmatprep.subr.bf16.mxu0 0
          %1875 = vmatpush1.bf16.msra.mxu0 0
          %1876 = vmatprep.subr.bf16.mxu0 0
          %1877 = vmatpush1.bf16.msra.mxu0 0
          %1878 = vmatprep.subr.bf16.mxu0 0
          %1879 = vmatpush1.bf16.msra.mxu0 0
          %1880 = vmatprep.subr.bf16.mxu0 0
          %1881 = vmatpush1.bf16.msra.mxu0 0
          %1882 = vmatprep.subr.bf16.mxu0 0
          %1883 = vmatpush1.bf16.msra.mxu0 0
          %1884 = vmatprep.subr.bf16.mxu0 0
          %1885 = vmatpush1.bf16.msra.mxu0 0
          %1886 = vmatprep.subr.bf16.mxu0 0
          %1887 = vmatpush1.bf16.msra.mxu0 0
          %1888 = vmatprep.subr.bf16.mxu0 0
          %1889 = vmatpush1.bf16.msra.mxu0 0
          %1890 = vmatprep.subr.bf16.mxu0 0
          %1891 = vmatpush1.bf16.msra.mxu0 0
          %1892 = vmatprep.subr.bf16.mxu0 0
          %1893 = vmatpush1.bf16.msra.mxu0 0
          %1894 = vmatprep.subr.bf16.mxu0 0
          %1895 = vmatpush1.bf16.msra.mxu0 0
          %1896 = vmatprep.subr.bf16.mxu0 0
          %1897 = vmatpush1.bf16.msra.mxu0 0
          %1898 = vmatprep.subr.bf16.mxu0 0
          %1899 = vmatpush1.bf16.msra.mxu0 0
          %1900 = vmatprep.mubr.bf16.mxu0 0
          %1901 = vmatmul.mubr.bf16.gmra.mrb[0].mxu0 %v1866
          %v1902 = vpop.f32.mrb[0].mxu0
          %v1903 = vadd.f32 %v1848, %v1902
          %v1904 = vpop.f32.mrb[0].mxu0
          %v1905 = vpop.f32.mrb[0].mxu0
          %v1906 = vadd.f32 %v1848, %v1905
          %v1907 = vpop.f32.mrb[0].mxu0
          %1908 = vdwg.mxu0
          %1909 = vst.msk [vmem:[%s14] sm:$0xff] %vm853, %v1903
          %1910 = vst.msk [vmem:[%s14 + $0x8] sm:$0xff] %vm853, %v1906
        $region112: #{tpu_custom_call.1} parent=75 // pred_fallthru
          _
        // Predicated region
        $region113: #{tpu_custom_call.1} parent=75 // pred_check
          %p1911 = pneg %p380
        $region114: #{tpu_custom_call.1} parent=75 // pred_check_branch
          %1913 = sbr.rel (%p1911) target = $region116
        $region115: #{tpu_custom_call.1} parent=75 // pred_region
          _
        $region116: #{tpu_custom_call.1} parent=75 // pred_fallthru
          _
        // Predicated region
        $region117: #{tpu_custom_call.1} parent=75 // pred_check
          %p1914 = pneg %p380
        $region118: #{tpu_custom_call.1} parent=75 // pred_check_branch
          %1916 = sbr.rel (%p1914) target = $region120
        $region119: #{tpu_custom_call.1} parent=75 // pred_region
          _
        $region120: #{tpu_custom_call.1} parent=75 // pred_fallthru
          _
      $region76: #{tpu_custom_call.1} parent=5 // pred_fallthru
        _
      %p1917 = scmp.le.s32.totalorder 2, %s28
      // Predicated region
      $region121: #{tpu_custom_call.1} parent=5 // pred_check
        %p1918 = pneg %p1917
      $region122: #{tpu_custom_call.1} parent=5 // pred_check_branch
        %1920 = sbr.rel (%p1918) target = $region124
      $region123: #{tpu_custom_call.1} parent=5 // pred_region
        %s1921 = ssub.s32 %s28, 2
      $region124: #{tpu_custom_call.1} parent=5 // pred_fallthru
        _
    $region6: #{tpu_custom_call.1} parent=1 // loop_footer
      %s32 = sadd.s32 1, %s28
    $region7: #{tpu_custom_call.1} parent=1 // loop_footer_branch
      %27 = sbr.rel target = $region3
    $region8: #{tpu_custom_call.1} parent=1 // loop_exit
      _
    %1922 = vsyncpa [#allocation5], 1
    %s1923 = scalar_lea.sflag [#allocation5], 1
    %1924 = vsyncpa %s1923, 1
    %1925 = vsyncpa [#allocation7], 1
    %1926 = vsyncpa [#allocation10], 1
    %s1927 = scalar_lea.sflag [#allocation10], 1
    %1928 = vsyncpa %s1927, 1
    %1929 = vsyncpa [#allocation13], 1
    %s1930 = scalar_lea.sflag [#allocation13], 1
    %1931 = vsyncpa %s1930, 1

</llo_original>
